<compile_context>
chip_gen: v6e
topology: v6e:2x2x1
jax: 0.10.0
libtpu: 0.0.40
codegen_flags: <defaults>
</compile_context>

<pallas_src>
import math
import jax
import jax.numpy as jnp
from jax.experimental import pallas as pl
from jax.experimental.pallas import tpu as pltpu

N_LAYERS = 2
N_HEADS = 4
EPS = 1e-6
NEG_INF = -1e9


def encoder_kernel(mask_ref, x_ref,
                   wqkv_ref, bqkv_ref, wo_ref, bo_ref,
                   w1_ref, b1_ref, w2_ref, b2_ref,
                   lnorm_ref, fnorm_ref,
                   out_ref,
                   x_scratch, attn_scratch):
    l = pl.program_id(1)                      # layer index (sequential grid axis)
    Bt, S, D = x_ref.shape
    dk = D // N_HEADS
    R = Bt * S
    scale = 1.0 / math.sqrt(dk)
    bf16 = jnp.bfloat16

    def layer_norm(y, a, b, exact=False):
        # Matches the module's LayerNorm: unbiased std (correction=1), eps added to std.
        mean = jnp.mean(y, axis=-1, keepdims=True)
        var = jnp.sum((y - mean) ** 2, axis=-1, keepdims=True) * (1.0 / (D - 1))
        denom = jnp.sqrt(var) + EPS
        inv = (1.0 / denom) if exact else pl.reciprocal(denom, approx=True)   # EUP slot
        return a * (y - mean) * inv + b

    # First layer step for this batch tile: load the activation into the carry scratch.
    @pl.when(l == 0)
    def _():
        x_scratch[...] = x_ref[...].reshape(R, D)

    x = x_scratch[...]                                            # f32 [R, D]

    # Additive attention mask (hoisted out of the head loop; cheap to recompute per step).
    mask_bias = jnp.where(mask_ref[...] == 0.0, NEG_INF, 0.0)     # [Bt, 1, S]

    # This grid step's layer weights (leading layer dim of every block is 1).
    wqkv = wqkv_ref[0]                                            # [D, 3D]  bf16
    bqkv = bqkv_ref[0]                                            # [1, 3D]  f32
    wo = wo_ref[0]; bo = bo_ref[0]
    w1 = w1_ref[0]; b1 = b1_ref[0]
    w2 = w2_ref[0]; b2 = b2_ref[0]
    ln = lnorm_ref[0]                                             # [4, D]   f32

    # ---- sublayer 0: pre-norm multi-head self-attention + residual ----
    xn = layer_norm(x, ln[0:1, :], ln[1:2, :])
    # Fused QKV projection: single [R, D] @ [D, 3D] MXU matmul (bf16 in, f32 acc).
    qkv = jnp.dot(xn.astype(bf16), wqkv, preferred_element_type=jnp.float32) + bqkv
    qkv_b = qkv.astype(bf16)                                      # single cast for all heads

    # TODO(synk): for large S (>= ~512) switch to a flash-style K-tiled online softmax
    # instead of materializing [Bt, S, S] scores per head.
    for h in range(N_HEADS):
        qh = qkv_b[:, h * dk:(h + 1) * dk].reshape(Bt, S, dk)
        kh = qkv_b[:, D + h * dk:D + (h + 1) * dk].reshape(Bt, S, dk)
        vh = qkv_b[:, 2 * D + h * dk:2 * D + (h + 1) * dk].reshape(Bt, S, dk)

        scores = jnp.einsum("bqd,bkd->bqk", qh, kh,
                            preferred_element_type=jnp.float32) * scale      # [Bt, S, S]
        scores = scores + mask_bias
        smax = jnp.max(scores, axis=-1, keepdims=True)
        p = jnp.exp(scores - smax)          # f32 exp: portable (v5e has no bf16 EUP)
        p = p * pl.reciprocal(jnp.sum(p, axis=-1, keepdims=True), approx=True)
        head = jnp.einsum("bqk,bkd->bqd", p.astype(bf16), vh,
                          preferred_element_type=jnp.float32)                # [Bt, S, dk]
        # Stash each head in its output-lane slot (bf16 scratch: half the store traffic)
        # so the output projection is a single [R, D] @ [D, D] matmul.
        attn_scratch[:, h * dk:(h + 1) * dk] = head.reshape(R, dk).astype(bf16)

    attn = jnp.dot(attn_scratch[...], wo, preferred_element_type=jnp.float32) + bo
    x = x + attn                             # dropout is identity in eval mode

    # ---- sublayer 1: pre-norm position-wise FFN + residual ----
    xn2 = layer_norm(x, ln[2:3, :], ln[3:4, :])
    h1 = jnp.maximum(jnp.dot(xn2.astype(bf16), w1,
                             preferred_element_type=jnp.float32) + b1, 0.0)
    ff = jnp.dot(h1.astype(bf16), w2, preferred_element_type=jnp.float32) + b2
    x = x + ff

    x_scratch[...] = x                       # carry to the next layer grid step

    # ---- final Encoder LayerNorm, written once on the last layer step ----
    @pl.when(l == pl.num_programs(1) - 1)
    def _():
        y = layer_norm(x, fnorm_ref[0:1, :], fnorm_ref[1:2, :], exact=True)
        out_ref[...] = y.reshape(Bt, S, D)


def _pick_batch_tile(B, S, target_rows=512, max_rows=2048):
    # Largest divisor of B with bt*S <= max_rows, preferring bt*S >= target_rows so the
    # MXU sees wide row tiles. Capped at B//2 so the parallel grid axis has >= 2 steps
    # (both v7x TensorCores get work; harmless elsewhere).
    cap = max(B // 2, 1)
    best = 1
    for bt in range(1, cap + 1):
        if B % bt == 0 and bt * S <= max_rows:
            best = bt
            if bt * S >= target_rows:
                break
    return best


def _vmem_limit_bytes():
    # Generation-aware VMEM cap: ~3/4 of physical, capped at 96 MiB
    # (v7x: 64 MiB/TC -> 48 MiB; v5e/v6e: 128 MiB -> 96 MiB).
    try:
        cap = int(pltpu.get_tpu_info().vmem_capacity_bytes)
    except Exception:
        cap = 64 * 1024 * 1024
    return min(cap * 3 // 4, 96 * 1024 * 1024)


def _pack_params(params):
    # Pack the 18 per-layer tensors into a few arrays; matmul weights stored bf16
    # (MXU operands), biases / norm params stay f32.
    bf16 = jnp.bfloat16
    wqkv = jnp.concatenate([params["wq"], params["wk"], params["wv"]], axis=-1).astype(bf16)
    bqkv = jnp.concatenate([params["bq"], params["bk"], params["bv"]], axis=-1)
    lnorms = jnp.concatenate([params["ln1a"], params["ln1b"],
                              params["ln2a"], params["ln2b"]], axis=1)        # [L, 4, D]
    fnorm = jnp.concatenate([params["fa"], params["fb"]], axis=0)             # [2, D]
    return [wqkv, bqkv,
            params["wo"].astype(bf16), params["bo"],
            params["w1"].astype(bf16), params["b1"],
            params["w2"].astype(bf16), params["b2"],
            lnorms, fnorm]


def encoder_forward(x, mask, params, *, batch_tile=None):
    B, S, D = x.shape
    bt = batch_tile if batch_tile is not None else _pick_batch_tile(B, S)
    assert B % bt == 0, "batch tile must divide batch"

    flat = _pack_params(params)
    (wqkv, bqkv, wo, bo, w1, b1, w2, b2, lnorms, fnorm) = flat

    def layer_spec(arr):
        # Per-layer tensors: stream one layer's slice per grid step along the layer axis.
        nd = arr.ndim
        return pl.BlockSpec((1,) + arr.shape[1:],
                            lambda i, l, _n=nd: (l,) + (0,) * (_n - 1))

    in_specs = ([pl.BlockSpec((bt, 1, S), lambda i, l: (i, 0, 0)),    # mask (layer-invariant)
                 pl.BlockSpec((bt, S, D), lambda i, l: (i, 0, 0))]    # x    (layer-invariant)
                + [layer_spec(a) for a in (wqkv, bqkv, wo, bo, w1, b1, w2, b2, lnorms)]
                + [pl.BlockSpec(fnorm.shape, lambda i, l: (0, 0))])   # final norm (tiny, const)

    return pl.pallas_call(
        encoder_kernel,
        out_shape=jax.ShapeDtypeStruct((B, S, D), jnp.float32),
        grid_spec=pltpu.PrefetchScalarGridSpec(
            num_scalar_prefetch=0,
            grid=(B // bt, N_LAYERS),          # batch tiles (parallel) x layers (sequential)
            in_specs=in_specs,
            # Output block is the same across the layer axis -> resident, written on last l.
            out_specs=pl.BlockSpec((bt, S, D), lambda i, l: (i, 0, 0)),
            scratch_shapes=[pltpu.VMEM((bt * S, D), jnp.float32),     # activation carry
                            pltpu.VMEM((bt * S, D), jnp.bfloat16)],   # head-concat buffer
        ),
        compiler_params=pltpu.CompilerParams(
            dimension_semantics=("parallel", "arbitrary"),
            vmem_limit_bytes=_vmem_limit_bytes(),
        ),
    )(mask, x, *flat)


def make_params(key, d_model, d_ff):
    ks = jax.random.split(key, 6)
    s = 0.02
    f32 = jnp.float32
    return {
        "wq": jax.random.normal(ks[0], (N_LAYERS, d_model, d_model), f32) * s,
        "bq": jnp.zeros((N_LAYERS, 1, d_model), f32),
        "wk": jax.random.normal(ks[1], (N_LAYERS, d_model, d_model), f32) * s,
        "bk": jnp.zeros((N_LAYERS, 1, d_model), f32),
        "wv": jax.random.normal(ks[2], (N_LAYERS, d_model, d_model), f32) * s,
        "bv": jnp.zeros((N_LAYERS, 1, d_model), f32),
        "wo": jax.random.normal(ks[3], (N_LAYERS, d_model, d_model), f32) * s,
        "bo": jnp.zeros((N_LAYERS, 1, d_model), f32),
        "w1": jax.random.normal(ks[4], (N_LAYERS, d_model, d_ff), f32) * s,
        "b1": jnp.zeros((N_LAYERS, 1, d_ff), f32),
        "w2": jax.random.normal(ks[5], (N_LAYERS, d_ff, d_model), f32) * s,
        "b2": jnp.zeros((N_LAYERS, 1, d_model), f32),
        "ln1a": jnp.ones((N_LAYERS, 1, d_model), f32),
        "ln1b": jnp.zeros((N_LAYERS, 1, d_model), f32),
        "ln2a": jnp.ones((N_LAYERS, 1, d_model), f32),
        "ln2b": jnp.zeros((N_LAYERS, 1, d_model), f32),
        "fa": jnp.ones((1, d_model), f32),
        "fb": jnp.zeros((1, d_model), f32),
    }


def encoder_ref(x, mask, params):
    # Pure-JAX f32 reference mirroring the PyTorch forward semantics.
    def ln(y, a, b, n):
        mean = y.mean(-1, keepdims=True)
        var = ((y - mean) ** 2).sum(-1, keepdims=True) / (n - 1)
        return a * (y - mean) / (jnp.sqrt(var) + EPS) + b

    B, S, D = x.shape
    dk = D // N_HEADS
    for l in range(N_LAYERS):
        xn = ln(x, params["ln1a"][l], params["ln1b"][l], D)
        q = xn @ params["wq"][l] + params["bq"][l]
        k = xn @ params["wk"][l] + params["bk"][l]
        v = xn @ params["wv"][l] + params["bv"][l]
        qh = q.reshape(B, S, N_HEADS, dk).transpose(0, 2, 1, 3)
        kh = k.reshape(B, S, N_HEADS, dk).transpose(0, 2, 1, 3)
        vh = v.reshape(B, S, N_HEADS, dk).transpose(0, 2, 1, 3)
        scores = jnp.einsum("bhqd,bhkd->bhqk", qh, kh) / math.sqrt(dk)
        scores = jnp.where(mask[:, None, :, :] == 0.0, NEG_INF, scores)
        p = jax.nn.softmax(scores, axis=-1)
        heads = jnp.einsum("bhqk,bhkd->bhqd", p, vh).transpose(0, 2, 1, 3).reshape(B, S, D)
        x = x + heads @ params["wo"][l] + params["bo"][l]
        xn2 = ln(x, params["ln2a"][l], params["ln2b"][l], D)
        ff = jnp.maximum(xn2 @ params["w1"][l] + params["b1"][l], 0.0) @ params["w2"][l] \
             + params["b2"][l]
        x = x + ff
    return ln(x, params["fa"], params["fb"], D)


if __name__ == "__main__":
    B, S, D, D_FF = 2, 8, 32, 64
    key = jax.random.PRNGKey(0)
    kx, kp = jax.random.split(key)

    x = jax.random.normal(kx, (B, S, D), jnp.float32)
    lengths = jnp.array([S, 5])
    mask = (jnp.arange(S)[None, None, :] < lengths[:, None, None]).astype(jnp.float32)

    params = make_params(kp, D, D_FF)

    out = encoder_forward(x, mask, params)
    jax.block_until_ready(out)

    ref = encoder_ref(x, mask, params)
    assert out.shape == (B, S, D)
    # bf16 MXU operands + approximate EUP reciprocals -> compare at bf16-level tolerance.
    assert jnp.allclose(out, ref, atol=1e-2, rtol=1e-2), "Pallas output mismatch vs reference"

    print("KERNEL_OK")
</pallas_src>

<mosaic_0001>
module attributes {stable_mosaic.version = 11 : i64} {
  func.func @encoder_kernel(%arg0: i32, %arg1: i32, %arg2: memref<1x1x8xf32, #tpu.memory_space<vmem>>, %arg3: memref<1x8x32xf32, #tpu.memory_space<vmem>>, %arg4: memref<1x32x96xbf16, #tpu.memory_space<vmem>>, %arg5: memref<1x1x96xf32, #tpu.memory_space<vmem>>, %arg6: memref<1x32x32xbf16, #tpu.memory_space<vmem>>, %arg7: memref<1x1x32xf32, #tpu.memory_space<vmem>>, %arg8: memref<1x32x64xbf16, #tpu.memory_space<vmem>>, %arg9: memref<1x1x64xf32, #tpu.memory_space<vmem>>, %arg10: memref<1x64x32xbf16, #tpu.memory_space<vmem>>, %arg11: memref<1x1x32xf32, #tpu.memory_space<vmem>>, %arg12: memref<1x4x32xf32, #tpu.memory_space<vmem>>, %arg13: memref<2x32xf32, #tpu.memory_space<vmem>>, %arg14: memref<1x8x32xf32, #tpu.memory_space<vmem>>, %arg15: memref<8x32xf32, #tpu.memory_space<vmem>>, %arg16: memref<8x32xbf16, #tpu.memory_space<vmem>>) attributes {dimension_semantics = [#tpu.dimension_semantics<parallel>, #tpu.dimension_semantics<arbitrary>], iteration_bounds = array<i64: 2, 2>, scalar_prefetch = 0 : i64, scratch_operands = 2 : i64, tpu.core_type = #tpu.core_type<tc>, window_params = [{transform_indices = @transform_0, window_bounds = array<i64: 1, 1, 8>}, {transform_indices = @transform_1, window_bounds = array<i64: 1, 8, 32>}, {transform_indices = @transform_2, window_bounds = array<i64: 1, 32, 96>}, {transform_indices = @transform_3, window_bounds = array<i64: 1, 1, 96>}, {transform_indices = @transform_4, window_bounds = array<i64: 1, 32, 32>}, {transform_indices = @transform_5, window_bounds = array<i64: 1, 1, 32>}, {transform_indices = @transform_6, window_bounds = array<i64: 1, 32, 64>}, {transform_indices = @transform_7, window_bounds = array<i64: 1, 1, 64>}, {transform_indices = @transform_8, window_bounds = array<i64: 1, 64, 32>}, {transform_indices = @transform_9, window_bounds = array<i64: 1, 1, 32>}, {transform_indices = @transform_10, window_bounds = array<i64: 1, 4, 32>}, {pipeline_mode = #tpu.pipeline_mode<synchronous>, transform_indices = @transform_11, window_bounds = array<i64: 2, 32>}, {transform_indices = @transform_12, window_bounds = array<i64: 1, 8, 32>}]} {
    %c0_i32 = arith.constant 0 : i32
    %0 = arith.cmpi eq, %arg1, %c0_i32 : i32
    %1 = arith.extui %0 : i1 to i32
    %c0_i32_0 = arith.constant 0 : i32
    %2 = arith.cmpi ne, %1, %c0_i32_0 : i32
    scf.if %2 {
      %c0_79 = arith.constant 0 : index
      %c0_80 = arith.constant 0 : index
      %c0_81 = arith.constant 0 : index
      %207 = vector.load %arg3[%c0_79, %c0_80, %c0_81] : memref<1x8x32xf32, #tpu.memory_space<vmem>>, vector<1x8x32xf32>
      %208 = vector.shape_cast %207 : vector<1x8x32xf32> to vector<8x32xf32>
      %c0_82 = arith.constant 0 : index
      %c0_83 = arith.constant 0 : index
      %209 = vector.load %arg15[%c0_82, %c0_83] : memref<8x32xf32, #tpu.memory_space<vmem>>, vector<8x32xf32>
      tpu.vector_store %arg15[%c0_82, %c0_83], %208 {strides = array<i32>} : memref<8x32xf32, #tpu.memory_space<vmem>>, vector<8x32xf32>,
    } else {
    }
    %c0 = arith.constant 0 : index
    %c0_1 = arith.constant 0 : index
    %3 = vector.load %arg15[%c0, %c0_1] : memref<8x32xf32, #tpu.memory_space<vmem>>, vector<8x32xf32>
    %c0_2 = arith.constant 0 : index
    %c0_3 = arith.constant 0 : index
    %c0_4 = arith.constant 0 : index
    %4 = vector.load %arg2[%c0_2, %c0_3, %c0_4] : memref<1x1x8xf32, #tpu.memory_space<vmem>>, vector<1x1x8xf32>
    %cst = arith.constant 0.000000e+00 : f32
    %5 = vector.broadcast %cst : f32 to vector<1x1x8xf32>
    %6 = arith.cmpf oeq, %4, %5 : vector<1x1x8xf32>
    %cst_5 = arith.constant -1.000000e+09 : f32
    %cst_6 = arith.constant 0.000000e+00 : f32
    %7 = vector.broadcast %cst_5 : f32 to vector<1x1x8xf32>
    %8 = vector.broadcast %cst_6 : f32 to vector<1x1x8xf32>
    %9 = arith.select %6, %7, %8 : vector<1x1x8xi1>, vector<1x1x8xf32>
    %c0_7 = arith.constant 0 : index
    %c0_8 = arith.constant 0 : index
    %c0_9 = arith.constant 0 : index
    %10 = vector.load %arg4[%c0_7, %c0_8, %c0_9] : memref<1x32x96xbf16, #tpu.memory_space<vmem>>, vector<1x32x96xbf16>
    %11 = vector.shape_cast %10 : vector<1x32x96xbf16> to vector<32x96xbf16>
    %c0_10 = arith.constant 0 : index
    %c0_11 = arith.constant 0 : index
    %c0_12 = arith.constant 0 : index
    %12 = vector.load %arg5[%c0_10, %c0_11, %c0_12] : memref<1x1x96xf32, #tpu.memory_space<vmem>>, vector<1x1x96xf32>
    %13 = vector.shape_cast %12 : vector<1x1x96xf32> to vector<1x96xf32>
    %c0_13 = arith.constant 0 : index
    %c0_14 = arith.constant 0 : index
    %c0_15 = arith.constant 0 : index
    %14 = vector.load %arg6[%c0_13, %c0_14, %c0_15] : memref<1x32x32xbf16, #tpu.memory_space<vmem>>, vector<1x32x32xbf16>
    %15 = vector.shape_cast %14 : vector<1x32x32xbf16> to vector<32x32xbf16>
    %c0_16 = arith.constant 0 : index
    %c0_17 = arith.constant 0 : index
    %c0_18 = arith.constant 0 : index
    %16 = vector.load %arg7[%c0_16, %c0_17, %c0_18] : memref<1x1x32xf32, #tpu.memory_space<vmem>>, vector<1x1x32xf32>
    %17 = vector.shape_cast %16 : vector<1x1x32xf32> to vector<1x32xf32>
    %c0_19 = arith.constant 0 : index
    %c0_20 = arith.constant 0 : index
    %c0_21 = arith.constant 0 : index
    %18 = vector.load %arg8[%c0_19, %c0_20, %c0_21] : memref<1x32x64xbf16, #tpu.memory_space<vmem>>, vector<1x32x64xbf16>
    %19 = vector.shape_cast %18 : vector<1x32x64xbf16> to vector<32x64xbf16>
    %c0_22 = arith.constant 0 : index
    %c0_23 = arith.constant 0 : index
    %c0_24 = arith.constant 0 : index
    %20 = vector.load %arg9[%c0_22, %c0_23, %c0_24] : memref<1x1x64xf32, #tpu.memory_space<vmem>>, vector<1x1x64xf32>
    %21 = vector.shape_cast %20 : vector<1x1x64xf32> to vector<1x64xf32>
    %c0_25 = arith.constant 0 : index
    %c0_26 = arith.constant 0 : index
    %c0_27 = arith.constant 0 : index
    %22 = vector.load %arg10[%c0_25, %c0_26, %c0_27] : memref<1x64x32xbf16, #tpu.memory_space<vmem>>, vector<1x64x32xbf16>
    %23 = vector.shape_cast %22 : vector<1x64x32xbf16> to vector<64x32xbf16>
    %c0_28 = arith.constant 0 : index
    %c0_29 = arith.constant 0 : index
    %c0_30 = arith.constant 0 : index
    %24 = vector.load %arg11[%c0_28, %c0_29, %c0_30] : memref<1x1x32xf32, #tpu.memory_space<vmem>>, vector<1x1x32xf32>
    %25 = vector.shape_cast %24 : vector<1x1x32xf32> to vector<1x32xf32>
    %c0_31 = arith.constant 0 : index
    %c0_32 = arith.constant 0 : index
    %c0_33 = arith.constant 0 : index
    %26 = vector.load %arg12[%c0_31, %c0_32, %c0_33] : memref<1x4x32xf32, #tpu.memory_space<vmem>>, vector<1x4x32xf32>
    %27 = vector.shape_cast %26 : vector<1x4x32xf32> to vector<4x32xf32>
    %28 = vector.extract_strided_slice %27 {offsets = [0, 0], sizes = [1, 32], strides = [1, 1]} : vector<4x32xf32> to vector<1x32xf32>
    %29 = vector.extract_strided_slice %27 {offsets = [1, 0], sizes = [1, 32], strides = [1, 1]} : vector<4x32xf32> to vector<1x32xf32>
    %cst_34 = arith.constant dense<0.000000e+00> : vector<8xf32>
    %30 = vector.multi_reduction <add>, %3, %cst_34 [1] : vector<8x32xf32> to vector<8xf32>
    %31 = vector.shape_cast %30 : vector<8xf32> to vector<8x1xf32>
    %cst_35 = arith.constant 3.200000e+01 : f32
    %32 = vector.broadcast %cst_35 : f32 to vector<8x1xf32>
    %33 = arith.divf %31, %32 : vector<8x1xf32>
    %34 = vector.broadcast %33 : vector<8x1xf32> to vector<8x32xf32>
    %35 = arith.subf %3, %34 : vector<8x32xf32>
    %36 = arith.mulf %35, %35 : vector<8x32xf32>
    %cst_36 = arith.constant dense<0.000000e+00> : vector<8xf32>
    %37 = vector.multi_reduction <add>, %36, %cst_36 [1] : vector<8x32xf32> to vector<8xf32>
    %38 = vector.shape_cast %37 : vector<8xf32> to vector<8x1xf32>
    %cst_37 = arith.constant 0.0322580636 : f32
    %39 = vector.broadcast %cst_37 : f32 to vector<8x1xf32>
    %40 = arith.mulf %38, %39 : vector<8x1xf32>
    %41 = math.sqrt %40 : vector<8x1xf32>
    %cst_38 = arith.constant 9.99999997E-7 : f32
    %42 = vector.broadcast %cst_38 : f32 to vector<8x1xf32>
    %43 = arith.addf %41, %42 : vector<8x1xf32>
    %44 = tpu.reciprocal %43 {approx = true} : vector<8x1xf32> -> vector<8x1xf32>
    %45 = vector.broadcast %33 : vector<8x1xf32> to vector<8x32xf32>
    %46 = arith.subf %3, %45 : vector<8x32xf32>
    %47 = vector.broadcast %28 : vector<1x32xf32> to vector<8x32xf32>
    %48 = arith.mulf %47, %46 : vector<8x32xf32>
    %49 = vector.broadcast %44 : vector<8x1xf32> to vector<8x32xf32>
    %50 = arith.mulf %48, %49 : vector<8x32xf32>
    %51 = vector.broadcast %29 : vector<1x32xf32> to vector<8x32xf32>
    %52 = arith.addf %50, %51 : vector<8x32xf32>
    %53 = arith.truncf %52 : vector<8x32xf32> to vector<8x32xbf16>
    %cst_39 = arith.constant dense<0.000000e+00> : vector<8x96xf32>
    %54 = tpu.matmul %53, %11, %cst_39 {dimension_numbers = #tpu.dot_dimension_numbers<[1], [0], [0], [1], [0, 0, 1, 1], [], []>} : vector<8x32xbf16>, vector<32x96xbf16>, vector<8x96xf32> -> vector<8x96xf32>
    %55 = vector.broadcast %13 : vector<1x96xf32> to vector<8x96xf32>
    %56 = arith.addf %54, %55 : vector<8x96xf32>
    %57 = arith.truncf %56 : vector<8x96xf32> to vector<8x96xbf16>
    %58 = vector.extract_strided_slice %57 {offsets = [0, 0], sizes = [8, 8], strides = [1, 1]} : vector<8x96xbf16> to vector<8x8xbf16>
    %59 = vector.shape_cast %58 : vector<8x8xbf16> to vector<1x8x8xbf16>
    %60 = vector.extract_strided_slice %57 {offsets = [0, 32], sizes = [8, 8], strides = [1, 1]} : vector<8x96xbf16> to vector<8x8xbf16>
    %61 = vector.shape_cast %60 : vector<8x8xbf16> to vector<1x8x8xbf16>
    %62 = vector.extract_strided_slice %57 {offsets = [0, 64], sizes = [8, 8], strides = [1, 1]} : vector<8x96xbf16> to vector<8x8xbf16>
    %63 = vector.shape_cast %62 : vector<8x8xbf16> to vector<1x8x8xbf16>
    "tpu.trace_start"() <{level = 10 : i32, message = "bqd,bkd->bqk"}> : () -> ()
    %cst_40 = arith.constant dense<0.000000e+00> : vector<1x8x8xf32>
    %64 = tpu.matmul %59, %61, %cst_40 {dimension_numbers = #tpu.dot_dimension_numbers<[2], [2], [1], [1], [0, 0, 0, 1, 1, 1], [0], [0]>} : vector<1x8x8xbf16>, vector<1x8x8xbf16>, vector<1x8x8xf32> -> vector<1x8x8xf32>
    "tpu.trace_stop"() : () -> ()
    %cst_41 = arith.constant 0.353553385 : f32
    %65 = vector.broadcast %cst_41 : f32 to vector<1x8x8xf32>
    %66 = arith.mulf %64, %65 : vector<1x8x8xf32>
    %67 = vector.broadcast %9 : vector<1x1x8xf32> to vector<1x8x8xf32>
    %68 = arith.addf %66, %67 : vector<1x8x8xf32>
    %cst_42 = arith.constant dense<0xFF800000> : vector<1x8xf32>
    %69 = vector.multi_reduction <maximumf>, %68, %cst_42 [2] : vector<1x8x8xf32> to vector<1x8xf32>
    %70 = vector.shape_cast %69 : vector<1x8xf32> to vector<1x8x1xf32>
    %71 = vector.broadcast %70 : vector<1x8x1xf32> to vector<1x8x8xf32>
    %72 = arith.subf %68, %71 : vector<1x8x8xf32>
    %73 = math.exp %72 : vector<1x8x8xf32>
    %cst_43 = arith.constant dense<0.000000e+00> : vector<1x8xf32>
    %74 = vector.multi_reduction <add>, %73, %cst_43 [2] : vector<1x8x8xf32> to vector<1x8xf32>
    %75 = vector.shape_cast %74 : vector<1x8xf32> to vector<1x8x1xf32>
    %76 = tpu.reciprocal %75 {approx = true} : vector<1x8x1xf32> -> vector<1x8x1xf32>
    %77 = vector.broadcast %76 : vector<1x8x1xf32> to vector<1x8x8xf32>
    %78 = arith.mulf %73, %77 : vector<1x8x8xf32>
    %79 = arith.truncf %78 : vector<1x8x8xf32> to vector<1x8x8xbf16>
    "tpu.trace_start"() <{level = 10 : i32, message = "bqk,bkd->bqd"}> : () -> ()
    %cst_44 = arith.constant dense<0.000000e+00> : vector<1x8x8xf32>
    %80 = tpu.matmul %79, %63, %cst_44 {dimension_numbers = #tpu.dot_dimension_numbers<[2], [1], [1], [2], [0, 0, 0, 1, 1, 2], [0], [0]>} : vector<1x8x8xbf16>, vector<1x8x8xbf16>, vector<1x8x8xf32> -> vector<1x8x8xf32>
    "tpu.trace_stop"() : () -> ()
    %81 = vector.shape_cast %80 : vector<1x8x8xf32> to vector<8x8xf32>
    %82 = arith.truncf %81 : vector<8x8xf32> to vector<8x8xbf16>
    %c0_45 = arith.constant 0 : index
    %c0_46 = arith.constant 0 : index
    %83 = vector.load %arg16[%c0_45, %c0_46] : memref<8x32xbf16, #tpu.memory_space<vmem>>, vector<8x8xbf16>
    tpu.vector_store %arg16[%c0_45, %c0_46], %82 {strides = array<i32>} : memref<8x32xbf16, #tpu.memory_space<vmem>>, vector<8x8xbf16>,
    %84 = vector.extract_strided_slice %57 {offsets = [0, 8], sizes = [8, 8], strides = [1, 1]} : vector<8x96xbf16> to vector<8x8xbf16>
    %85 = vector.shape_cast %84 : vector<8x8xbf16> to vector<1x8x8xbf16>
    %86 = vector.extract_strided_slice %57 {offsets = [0, 40], sizes = [8, 8], strides = [1, 1]} : vector<8x96xbf16> to vector<8x8xbf16>
    %87 = vector.shape_cast %86 : vector<8x8xbf16> to vector<1x8x8xbf16>
    %88 = vector.extract_strided_slice %57 {offsets = [0, 72], sizes = [8, 8], strides = [1, 1]} : vector<8x96xbf16> to vector<8x8xbf16>
    %89 = vector.shape_cast %88 : vector<8x8xbf16> to vector<1x8x8xbf16>
    "tpu.trace_start"() <{level = 10 : i32, message = "bqd,bkd->bqk"}> : () -> ()
    %cst_47 = arith.constant dense<0.000000e+00> : vector<1x8x8xf32>
    %90 = tpu.matmul %85, %87, %cst_47 {dimension_numbers = #tpu.dot_dimension_numbers<[2], [2], [1], [1], [0, 0, 0, 1, 1, 1], [0], [0]>} : vector<1x8x8xbf16>, vector<1x8x8xbf16>, vector<1x8x8xf32> -> vector<1x8x8xf32>
    "tpu.trace_stop"() : () -> ()
    %cst_48 = arith.constant 0.353553385 : f32
    %91 = vector.broadcast %cst_48 : f32 to vector<1x8x8xf32>
    %92 = arith.mulf %90, %91 : vector<1x8x8xf32>
    %93 = vector.broadcast %9 : vector<1x1x8xf32> to vector<1x8x8xf32>
    %94 = arith.addf %92, %93 : vector<1x8x8xf32>
    %cst_49 = arith.constant dense<0xFF800000> : vector<1x8xf32>
    %95 = vector.multi_reduction <maximumf>, %94, %cst_49 [2] : vector<1x8x8xf32> to vector<1x8xf32>
    %96 = vector.shape_cast %95 : vector<1x8xf32> to vector<1x8x1xf32>
    %97 = vector.broadcast %96 : vector<1x8x1xf32> to vector<1x8x8xf32>
    %98 = arith.subf %94, %97 : vector<1x8x8xf32>
    %99 = math.exp %98 : vector<1x8x8xf32>
    %cst_50 = arith.constant dense<0.000000e+00> : vector<1x8xf32>
    %100 = vector.multi_reduction <add>, %99, %cst_50 [2] : vector<1x8x8xf32> to vector<1x8xf32>
    %101 = vector.shape_cast %100 : vector<1x8xf32> to vector<1x8x1xf32>
    %102 = tpu.reciprocal %101 {approx = true} : vector<1x8x1xf32> -> vector<1x8x1xf32>
    %103 = vector.broadcast %102 : vector<1x8x1xf32> to vector<1x8x8xf32>
    %104 = arith.mulf %99, %103 : vector<1x8x8xf32>
    %105 = arith.truncf %104 : vector<1x8x8xf32> to vector<1x8x8xbf16>
    "tpu.trace_start"() <{level = 10 : i32, message = "bqk,bkd->bqd"}> : () -> ()
    %cst_51 = arith.constant dense<0.000000e+00> : vector<1x8x8xf32>
    %106 = tpu.matmul %105, %89, %cst_51 {dimension_numbers = #tpu.dot_dimension_numbers<[2], [1], [1], [2], [0, 0, 0, 1, 1, 2], [0], [0]>} : vector<1x8x8xbf16>, vector<1x8x8xbf16>, vector<1x8x8xf32> -> vector<1x8x8xf32>
    "tpu.trace_stop"() : () -> ()
    %107 = vector.shape_cast %106 : vector<1x8x8xf32> to vector<8x8xf32>
    %108 = arith.truncf %107 : vector<8x8xf32> to vector<8x8xbf16>
    %c0_52 = arith.constant 0 : index
    %c8 = arith.constant 8 : index
    %109 = vector.load %arg16[%c0_52, %c8] : memref<8x32xbf16, #tpu.memory_space<vmem>>, vector<8x8xbf16>
    tpu.vector_store %arg16[%c0_52, %c8], %108 {strides = array<i32>} : memref<8x32xbf16, #tpu.memory_space<vmem>>, vector<8x8xbf16>,
    %110 = vector.extract_strided_slice %57 {offsets = [0, 16], sizes = [8, 8], strides = [1, 1]} : vector<8x96xbf16> to vector<8x8xbf16>
    %111 = vector.shape_cast %110 : vector<8x8xbf16> to vector<1x8x8xbf16>
    %112 = vector.extract_strided_slice %57 {offsets = [0, 48], sizes = [8, 8], strides = [1, 1]} : vector<8x96xbf16> to vector<8x8xbf16>
    %113 = vector.shape_cast %112 : vector<8x8xbf16> to vector<1x8x8xbf16>
    %114 = vector.extract_strided_slice %57 {offsets = [0, 80], sizes = [8, 8], strides = [1, 1]} : vector<8x96xbf16> to vector<8x8xbf16>
    %115 = vector.shape_cast %114 : vector<8x8xbf16> to vector<1x8x8xbf16>
    "tpu.trace_start"() <{level = 10 : i32, message = "bqd,bkd->bqk"}> : () -> ()
    %cst_53 = arith.constant dense<0.000000e+00> : vector<1x8x8xf32>
    %116 = tpu.matmul %111, %113, %cst_53 {dimension_numbers = #tpu.dot_dimension_numbers<[2], [2], [1], [1], [0, 0, 0, 1, 1, 1], [0], [0]>} : vector<1x8x8xbf16>, vector<1x8x8xbf16>, vector<1x8x8xf32> -> vector<1x8x8xf32>
    "tpu.trace_stop"() : () -> ()
    %cst_54 = arith.constant 0.353553385 : f32
    %117 = vector.broadcast %cst_54 : f32 to vector<1x8x8xf32>
    %118 = arith.mulf %116, %117 : vector<1x8x8xf32>
    %119 = vector.broadcast %9 : vector<1x1x8xf32> to vector<1x8x8xf32>
    %120 = arith.addf %118, %119 : vector<1x8x8xf32>
    %cst_55 = arith.constant dense<0xFF800000> : vector<1x8xf32>
    %121 = vector.multi_reduction <maximumf>, %120, %cst_55 [2] : vector<1x8x8xf32> to vector<1x8xf32>
    %122 = vector.shape_cast %121 : vector<1x8xf32> to vector<1x8x1xf32>
    %123 = vector.broadcast %122 : vector<1x8x1xf32> to vector<1x8x8xf32>
    %124 = arith.subf %120, %123 : vector<1x8x8xf32>
    %125 = math.exp %124 : vector<1x8x8xf32>
    %cst_56 = arith.constant dense<0.000000e+00> : vector<1x8xf32>
    %126 = vector.multi_reduction <add>, %125, %cst_56 [2] : vector<1x8x8xf32> to vector<1x8xf32>
    %127 = vector.shape_cast %126 : vector<1x8xf32> to vector<1x8x1xf32>
    %128 = tpu.reciprocal %127 {approx = true} : vector<1x8x1xf32> -> vector<1x8x1xf32>
    %129 = vector.broadcast %128 : vector<1x8x1xf32> to vector<1x8x8xf32>
    %130 = arith.mulf %125, %129 : vector<1x8x8xf32>
    %131 = arith.truncf %130 : vector<1x8x8xf32> to vector<1x8x8xbf16>
    "tpu.trace_start"() <{level = 10 : i32, message = "bqk,bkd->bqd"}> : () -> ()
    %cst_57 = arith.constant dense<0.000000e+00> : vector<1x8x8xf32>
    %132 = tpu.matmul %131, %115, %cst_57 {dimension_numbers = #tpu.dot_dimension_numbers<[2], [1], [1], [2], [0, 0, 0, 1, 1, 2], [0], [0]>} : vector<1x8x8xbf16>, vector<1x8x8xbf16>, vector<1x8x8xf32> -> vector<1x8x8xf32>
    "tpu.trace_stop"() : () -> ()
    %133 = vector.shape_cast %132 : vector<1x8x8xf32> to vector<8x8xf32>
    %134 = arith.truncf %133 : vector<8x8xf32> to vector<8x8xbf16>
    %c0_58 = arith.constant 0 : index
    %c16 = arith.constant 16 : index
    %135 = vector.load %arg16[%c0_58, %c16] : memref<8x32xbf16, #tpu.memory_space<vmem>>, vector<8x8xbf16>
    tpu.vector_store %arg16[%c0_58, %c16], %134 {strides = array<i32>} : memref<8x32xbf16, #tpu.memory_space<vmem>>, vector<8x8xbf16>,
    %136 = vector.extract_strided_slice %57 {offsets = [0, 24], sizes = [8, 8], strides = [1, 1]} : vector<8x96xbf16> to vector<8x8xbf16>
    %137 = vector.shape_cast %136 : vector<8x8xbf16> to vector<1x8x8xbf16>
    %138 = vector.extract_strided_slice %57 {offsets = [0, 56], sizes = [8, 8], strides = [1, 1]} : vector<8x96xbf16> to vector<8x8xbf16>
    %139 = vector.shape_cast %138 : vector<8x8xbf16> to vector<1x8x8xbf16>
    %140 = vector.extract_strided_slice %57 {offsets = [0, 88], sizes = [8, 8], strides = [1, 1]} : vector<8x96xbf16> to vector<8x8xbf16>
    %141 = vector.shape_cast %140 : vector<8x8xbf16> to vector<1x8x8xbf16>
    "tpu.trace_start"() <{level = 10 : i32, message = "bqd,bkd->bqk"}> : () -> ()
    %cst_59 = arith.constant dense<0.000000e+00> : vector<1x8x8xf32>
    %142 = tpu.matmul %137, %139, %cst_59 {dimension_numbers = #tpu.dot_dimension_numbers<[2], [2], [1], [1], [0, 0, 0, 1, 1, 1], [0], [0]>} : vector<1x8x8xbf16>, vector<1x8x8xbf16>, vector<1x8x8xf32> -> vector<1x8x8xf32>
    "tpu.trace_stop"() : () -> ()
    %cst_60 = arith.constant 0.353553385 : f32
    %143 = vector.broadcast %cst_60 : f32 to vector<1x8x8xf32>
    %144 = arith.mulf %142, %143 : vector<1x8x8xf32>
    %145 = vector.broadcast %9 : vector<1x1x8xf32> to vector<1x8x8xf32>
    %146 = arith.addf %144, %145 : vector<1x8x8xf32>
    %cst_61 = arith.constant dense<0xFF800000> : vector<1x8xf32>
    %147 = vector.multi_reduction <maximumf>, %146, %cst_61 [2] : vector<1x8x8xf32> to vector<1x8xf32>
    %148 = vector.shape_cast %147 : vector<1x8xf32> to vector<1x8x1xf32>
    %149 = vector.broadcast %148 : vector<1x8x1xf32> to vector<1x8x8xf32>
    %150 = arith.subf %146, %149 : vector<1x8x8xf32>
    %151 = math.exp %150 : vector<1x8x8xf32>
    %cst_62 = arith.constant dense<0.000000e+00> : vector<1x8xf32>
    %152 = vector.multi_reduction <add>, %151, %cst_62 [2] : vector<1x8x8xf32> to vector<1x8xf32>
    %153 = vector.shape_cast %152 : vector<1x8xf32> to vector<1x8x1xf32>
    %154 = tpu.reciprocal %153 {approx = true} : vector<1x8x1xf32> -> vector<1x8x1xf32>
    %155 = vector.broadcast %154 : vector<1x8x1xf32> to vector<1x8x8xf32>
    %156 = arith.mulf %151, %155 : vector<1x8x8xf32>
    %157 = arith.truncf %156 : vector<1x8x8xf32> to vector<1x8x8xbf16>
    "tpu.trace_start"() <{level = 10 : i32, message = "bqk,bkd->bqd"}> : () -> ()
    %cst_63 = arith.constant dense<0.000000e+00> : vector<1x8x8xf32>
    %158 = tpu.matmul %157, %141, %cst_63 {dimension_numbers = #tpu.dot_dimension_numbers<[2], [1], [1], [2], [0, 0, 0, 1, 1, 2], [0], [0]>} : vector<1x8x8xbf16>, vector<1x8x8xbf16>, vector<1x8x8xf32> -> vector<1x8x8xf32>
    "tpu.trace_stop"() : () -> ()
    %159 = vector.shape_cast %158 : vector<1x8x8xf32> to vector<8x8xf32>
    %160 = arith.truncf %159 : vector<8x8xf32> to vector<8x8xbf16>
    %c0_64 = arith.constant 0 : index
    %c24 = arith.constant 24 : index
    %161 = vector.load %arg16[%c0_64, %c24] : memref<8x32xbf16, #tpu.memory_space<vmem>>, vector<8x8xbf16>
    tpu.vector_store %arg16[%c0_64, %c24], %160 {strides = array<i32>} : memref<8x32xbf16, #tpu.memory_space<vmem>>, vector<8x8xbf16>,
    %c0_65 = arith.constant 0 : index
    %c0_66 = arith.constant 0 : index
    %162 = vector.load %arg16[%c0_65, %c0_66] : memref<8x32xbf16, #tpu.memory_space<vmem>>, vector<8x32xbf16>
    %cst_67 = arith.constant dense<0.000000e+00> : vector<8x32xf32>
    %163 = tpu.matmul %162, %15, %cst_67 {dimension_numbers = #tpu.dot_dimension_numbers<[1], [0], [0], [1], [0, 0, 1, 1], [], []>} : vector<8x32xbf16>, vector<32x32xbf16>, vector<8x32xf32> -> vector<8x32xf32>
    %164 = vector.broadcast %17 : vector<1x32xf32> to vector<8x32xf32>
    %165 = arith.addf %163, %164 : vector<8x32xf32>
    %166 = arith.addf %3, %165 : vector<8x32xf32>
    %167 = vector.extract_strided_slice %27 {offsets = [2, 0], sizes = [1, 32], strides = [1, 1]} : vector<4x32xf32> to vector<1x32xf32>
    %168 = vector.extract_strided_slice %27 {offsets = [3, 0], sizes = [1, 32], strides = [1, 1]} : vector<4x32xf32> to vector<1x32xf32>
    %cst_68 = arith.constant dense<0.000000e+00> : vector<8xf32>
    %169 = vector.multi_reduction <add>, %166, %cst_68 [1] : vector<8x32xf32> to vector<8xf32>
    %170 = vector.shape_cast %169 : vector<8xf32> to vector<8x1xf32>
    %cst_69 = arith.constant 3.200000e+01 : f32
    %171 = vector.broadcast %cst_69 : f32 to vector<8x1xf32>
    %172 = arith.divf %170, %171 : vector<8x1xf32>
    %173 = vector.broadcast %172 : vector<8x1xf32> to vector<8x32xf32>
    %174 = arith.subf %166, %173 : vector<8x32xf32>
    %175 = arith.mulf %174, %174 : vector<8x32xf32>
    %cst_70 = arith.constant dense<0.000000e+00> : vector<8xf32>
    %176 = vector.multi_reduction <add>, %175, %cst_70 [1] : vector<8x32xf32> to vector<8xf32>
    %177 = vector.shape_cast %176 : vector<8xf32> to vector<8x1xf32>
    %cst_71 = arith.constant 0.0322580636 : f32
    %178 = vector.broadcast %cst_71 : f32 to vector<8x1xf32>
    %179 = arith.mulf %177, %178 : vector<8x1xf32>
    %180 = math.sqrt %179 : vector<8x1xf32>
    %cst_72 = arith.constant 9.99999997E-7 : f32
    %181 = vector.broadcast %cst_72 : f32 to vector<8x1xf32>
    %182 = arith.addf %180, %181 : vector<8x1xf32>
    %183 = tpu.reciprocal %182 {approx = true} : vector<8x1xf32> -> vector<8x1xf32>
    %184 = vector.broadcast %172 : vector<8x1xf32> to vector<8x32xf32>
    %185 = arith.subf %166, %184 : vector<8x32xf32>
    %186 = vector.broadcast %167 : vector<1x32xf32> to vector<8x32xf32>
    %187 = arith.mulf %186, %185 : vector<8x32xf32>
    %188 = vector.broadcast %183 : vector<8x1xf32> to vector<8x32xf32>
    %189 = arith.mulf %187, %188 : vector<8x32xf32>
    %190 = vector.broadcast %168 : vector<1x32xf32> to vector<8x32xf32>
    %191 = arith.addf %189, %190 : vector<8x32xf32>
    %192 = arith.truncf %191 : vector<8x32xf32> to vector<8x32xbf16>
    %cst_73 = arith.constant dense<0.000000e+00> : vector<8x64xf32>
    %193 = tpu.matmul %192, %19, %cst_73 {dimension_numbers = #tpu.dot_dimension_numbers<[1], [0], [0], [1], [0, 0, 1, 1], [], []>} : vector<8x32xbf16>, vector<32x64xbf16>, vector<8x64xf32> -> vector<8x64xf32>
    %194 = vector.broadcast %21 : vector<1x64xf32> to vector<8x64xf32>
    %195 = arith.addf %193, %194 : vector<8x64xf32>
    %cst_74 = arith.constant 0.000000e+00 : f32
    %196 = vector.broadcast %cst_74 : f32 to vector<8x64xf32>
    %197 = arith.maximumf %195, %196 : vector<8x64xf32>
    %198 = arith.truncf %197 : vector<8x64xf32> to vector<8x64xbf16>
    %cst_75 = arith.constant dense<0.000000e+00> : vector<8x32xf32>
    %199 = tpu.matmul %198, %23, %cst_75 {dimension_numbers = #tpu.dot_dimension_numbers<[1], [0], [0], [1], [0, 0, 1, 1], [], []>} : vector<8x64xbf16>, vector<64x32xbf16>, vector<8x32xf32> -> vector<8x32xf32>
    %200 = vector.broadcast %25 : vector<1x32xf32> to vector<8x32xf32>
    %201 = arith.addf %199, %200 : vector<8x32xf32>
    %202 = arith.addf %166, %201 : vector<8x32xf32>
    %c0_76 = arith.constant 0 : index
    %c0_77 = arith.constant 0 : index
    %203 = vector.load %arg15[%c0_76, %c0_77] : memref<8x32xf32, #tpu.memory_space<vmem>>, vector<8x32xf32>
    tpu.vector_store %arg15[%c0_76, %c0_77], %202 {strides = array<i32>} : memref<8x32xf32, #tpu.memory_space<vmem>>, vector<8x32xf32>,
    %c1_i32 = arith.constant 1 : i32
    %204 = arith.cmpi eq, %arg1, %c1_i32 : i32
    %205 = arith.extui %204 : i1 to i32
    %c0_i32_78 = arith.constant 0 : i32
    %206 = arith.cmpi ne, %205, %c0_i32_78 : i32
    scf.if %206 {
      %c0_79 = arith.constant 0 : index
      %c0_80 = arith.constant 0 : index
      %207 = vector.load %arg13[%c0_79, %c0_80] : memref<2x32xf32, #tpu.memory_space<vmem>>, vector<1x32xf32>
      %c1 = arith.constant 1 : index
      %c0_81 = arith.constant 0 : index
      %208 = vector.load %arg13[%c1, %c0_81] : memref<2x32xf32, #tpu.memory_space<vmem>>, vector<1x32xf32>
      %cst_82 = arith.constant dense<0.000000e+00> : vector<8xf32>
      %209 = vector.multi_reduction <add>, %202, %cst_82 [1] : vector<8x32xf32> to vector<8xf32>
      %210 = vector.shape_cast %209 : vector<8xf32> to vector<8x1xf32>
      %cst_83 = arith.constant 3.200000e+01 : f32
      %211 = vector.broadcast %cst_83 : f32 to vector<8x1xf32>
      %212 = arith.divf %210, %211 : vector<8x1xf32>
      %213 = vector.broadcast %212 : vector<8x1xf32> to vector<8x32xf32>
      %214 = arith.subf %202, %213 : vector<8x32xf32>
      %215 = arith.mulf %214, %214 : vector<8x32xf32>
      %cst_84 = arith.constant dense<0.000000e+00> : vector<8xf32>
      %216 = vector.multi_reduction <add>, %215, %cst_84 [1] : vector<8x32xf32> to vector<8xf32>
      %217 = vector.shape_cast %216 : vector<8xf32> to vector<8x1xf32>
      %cst_85 = arith.constant 0.0322580636 : f32
      %218 = vector.broadcast %cst_85 : f32 to vector<8x1xf32>
      %219 = arith.mulf %217, %218 : vector<8x1xf32>
      %220 = math.sqrt %219 : vector<8x1xf32>
      %cst_86 = arith.constant 9.99999997E-7 : f32
      %221 = vector.broadcast %cst_86 : f32 to vector<8x1xf32>
      %222 = arith.addf %220, %221 : vector<8x1xf32>
      %cst_87 = arith.constant 1.000000e+00 : f32
      %223 = vector.broadcast %cst_87 : f32 to vector<8x1xf32>
      %224 = arith.divf %223, %222 : vector<8x1xf32>
      %225 = vector.broadcast %212 : vector<8x1xf32> to vector<8x32xf32>
      %226 = arith.subf %202, %225 : vector<8x32xf32>
      %227 = vector.broadcast %207 : vector<1x32xf32> to vector<8x32xf32>
      %228 = arith.mulf %227, %226 : vector<8x32xf32>
      %229 = vector.broadcast %224 : vector<8x1xf32> to vector<8x32xf32>
      %230 = arith.mulf %228, %229 : vector<8x32xf32>
      %231 = vector.broadcast %208 : vector<1x32xf32> to vector<8x32xf32>
      %232 = arith.addf %230, %231 : vector<8x32xf32>
      %233 = vector.shape_cast %232 : vector<8x32xf32> to vector<1x8x32xf32>
      %c0_88 = arith.constant 0 : index
      %c0_89 = arith.constant 0 : index
      %c0_90 = arith.constant 0 : index
      %234 = vector.load %arg14[%c0_88, %c0_89, %c0_90] : memref<1x8x32xf32, #tpu.memory_space<vmem>>, vector<1x8x32xf32>
      tpu.vector_store %arg14[%c0_88, %c0_89, %c0_90], %233 {strides = array<i32>} : memref<1x8x32xf32, #tpu.memory_space<vmem>>, vector<1x8x32xf32>,
    } else {
    }
    return
  }
  func.func @transform_0(%arg0: i32, %arg1: i32) -> (i32, i32, i32) {
    %c0_i32 = arith.constant 0 : i32
    %c0_i32_0 = arith.constant 0 : i32
    %c0_i32_1 = arith.constant 0 : i32
    return %arg0, %c0_i32, %c0_i32_0 : i32, i32, i32
  }
  func.func @transform_1(%arg0: i32, %arg1: i32) -> (i32, i32, i32) {
    %c0_i32 = arith.constant 0 : i32
    %c0_i32_0 = arith.constant 0 : i32
    %c0_i32_1 = arith.constant 0 : i32
    return %arg0, %c0_i32, %c0_i32_0 : i32, i32, i32
  }
  func.func @transform_2(%arg0: i32, %arg1: i32) -> (i32, i32, i32) {
    %c0_i32 = arith.constant 0 : i32
    %c0_i32_0 = arith.constant 0 : i32
    %c0_i32_1 = arith.constant 0 : i32
    return %arg1, %c0_i32, %c0_i32_0 : i32, i32, i32
  }
  func.func @transform_3(%arg0: i32, %arg1: i32) -> (i32, i32, i32) {
    %c0_i32 = arith.constant 0 : i32
    %c0_i32_0 = arith.constant 0 : i32
    %c0_i32_1 = arith.constant 0 : i32
    return %arg1, %c0_i32, %c0_i32_0 : i32, i32, i32
  }
  func.func @transform_4(%arg0: i32, %arg1: i32) -> (i32, i32, i32) {
    %c0_i32 = arith.constant 0 : i32
    %c0_i32_0 = arith.constant 0 : i32
    %c0_i32_1 = arith.constant 0 : i32
    return %arg1, %c0_i32, %c0_i32_0 : i32, i32, i32
  }
  func.func @transform_5(%arg0: i32, %arg1: i32) -> (i32, i32, i32) {
    %c0_i32 = arith.constant 0 : i32
    %c0_i32_0 = arith.constant 0 : i32
    %c0_i32_1 = arith.constant 0 : i32
    return %arg1, %c0_i32, %c0_i32_0 : i32, i32, i32
  }
  func.func @transform_6(%arg0: i32, %arg1: i32) -> (i32, i32, i32) {
    %c0_i32 = arith.constant 0 : i32
    %c0_i32_0 = arith.constant 0 : i32
    %c0_i32_1 = arith.constant 0 : i32
    return %arg1, %c0_i32, %c0_i32_0 : i32, i32, i32
  }
  func.func @transform_7(%arg0: i32, %arg1: i32) -> (i32, i32, i32) {
    %c0_i32 = arith.constant 0 : i32
    %c0_i32_0 = arith.constant 0 : i32
    %c0_i32_1 = arith.constant 0 : i32
    return %arg1, %c0_i32, %c0_i32_0 : i32, i32, i32
  }
  func.func @transform_8(%arg0: i32, %arg1: i32) -> (i32, i32, i32) {
    %c0_i32 = arith.constant 0 : i32
    %c0_i32_0 = arith.constant 0 : i32
    %c0_i32_1 = arith.constant 0 : i32
    return %arg1, %c0_i32, %c0_i32_0 : i32, i32, i32
  }
  func.func @transform_9(%arg0: i32, %arg1: i32) -> (i32, i32, i32) {
    %c0_i32 = arith.constant 0 : i32
    %c0_i32_0 = arith.constant 0 : i32
    %c0_i32_1 = arith.constant 0 : i32
    return %arg1, %c0_i32, %c0_i32_0 : i32, i32, i32
  }
  func.func @transform_10(%arg0: i32, %arg1: i32) -> (i32, i32, i32) {
    %c0_i32 = arith.constant 0 : i32
    %c0_i32_0 = arith.constant 0 : i32
    %c0_i32_1 = arith.constant 0 : i32
    return %arg1, %c0_i32, %c0_i32_0 : i32, i32, i32
  }
  func.func @transform_11(%arg0: i32, %arg1: i32) -> (i32, i32) {
    %c0_i32 = arith.constant 0 : i32
    %c0_i32_0 = arith.constant 0 : i32
    %c0_i32_1 = arith.constant 0 : i32
    return %c0_i32, %c0_i32_0 : i32, i32
  }
  func.func @transform_12(%arg0: i32, %arg1: i32) -> (i32, i32, i32) {
    %c0_i32 = arith.constant 0 : i32
    %c0_i32_0 = arith.constant 0 : i32
    %c0_i32_1 = arith.constant 0 : i32
    return %arg0, %c0_i32, %c0_i32_0 : i32, i32, i32
  }
}

</mosaic_0001>

<llo_original>
// kernel: tpu_custom_call.1
$region0: #{tpu_custom_call.1}
  #allocation0 [shape = 'u32[]', space=smem, size = 0x4, offset = 0x4, fixed_abs, tag = 'smem constant byte address 0x4 - core index']
  #allocation1 [shape = 'u32[144,128]{1,0:T(1,128)}', space=vmem, size = 0x12000, scoped, tag = 'internal scratch']
  #allocation2 [shape = 'f32[8,32]{1,0:T(8,128)}', space=vmem, size = 0x1000, scoped, tag = 'scratch operand']
  #allocation3 [shape = 'bf16[8,32]{1,0:T(8,128)(2,1)}', space=vmem, size = 0x800, scoped, tag = 'scratch operand']
  %s0 = inlined_call_operand.hbm [shape: f32[2,1,8], index: 0, kind: input, shape index: {}]
  %s1 = inlined_call_operand.hbm [shape: f32[2,8,32], index: 1, kind: input, shape index: {}]
  %s2 = inlined_call_operand.vmem [shape: bf16[2,32,96], index: 2, kind: input, shape index: {}]
  %s3 = inlined_call_operand.hbm [shape: f32[2,1,96], index: 3, kind: input, shape index: {}]
  %s4 = inlined_call_operand.vmem [shape: bf16[2,32,32], index: 4, kind: input, shape index: {}]
  %s5 = inlined_call_operand.hbm [shape: f32[2,1,32], index: 5, kind: input, shape index: {}]
  %s6 = inlined_call_operand.vmem [shape: bf16[2,32,64], index: 6, kind: input, shape index: {}]
  %s7 = inlined_call_operand.vmem [shape: f32[2,1,64], index: 7, kind: input, shape index: {}]
  %s8 = inlined_call_operand.vmem [shape: bf16[2,64,32], index: 8, kind: input, shape index: {}]
  %s9 = inlined_call_operand.vmem [shape: f32[2,1,32], index: 9, kind: input, shape index: {}]
  %s10 = inlined_call_operand.vmem [shape: f32[2,4,32], index: 10, kind: input, shape index: {}]
  %s11 = inlined_call_operand.vmem [shape: f32[2,32], index: 11, kind: input, shape index: {}]
  %s12 = inlined_call_operand.hbm [shape: f32[2,8,32], index: 12, kind: output, shape index: {}]
  %s13 = sld [smem:[#allocation0]]
  $region105: #{tpu_custom_call.1} parent=0
    _
  %s15 = ssub.s32 1, %s13
  %s16 = scalar_select 0, %s15, %s13
  $region1: #{tpu_custom_call.1} parent=0
    #allocation4 [shape = 'u8[1024]{0}', space=vmem, size = 0x400, scoped, tag = 'input window, operand 0']
    #allocation5 [shape = 's32[2]{0}', space=sflag, size = 0x8, scoped, tag = 'scoped memory for tpu_custom_call.1']
    #allocation6 [shape = 's32[2]{0}', space=sflag, size = 0x8, scoped, tag = 'scoped memory for tpu_custom_call.1']
    #allocation7 [shape = 'u8[8192]{0}', space=vmem, size = 0x2000, scoped, tag = 'input window, operand 1']
    #allocation8 [shape = 's32[2]{0}', space=sflag, size = 0x8, scoped, tag = 'scoped memory for tpu_custom_call.1']
    #allocation9 [shape = 'u8[1024]{0}', space=vmem, size = 0x400, scoped, tag = 'input window, operand 3']
    #allocation10 [shape = 'u8[1024]{0}', space=vmem, size = 0x400, scoped, tag = 'input window, operand 5']
    #allocation11 [shape = 's32[2]{0}', space=sflag, size = 0x8, scoped, tag = 'scoped memory for tpu_custom_call.1']
    #allocation12 [shape = 'u8[8192]{0}', space=vmem, size = 0x2000, scoped, tag = 'output window, operand 0']
    %17 = vsyncpa [#allocation5], 0
    %s18 = scalar_lea.sflag [#allocation5], 1
    %19 = vsyncpa %s18, 0
    %20 = vsyncpa [#allocation8], 0
    %s21 = scalar_lea.sflag [#allocation8], 1
    %22 = vsyncpa %s21, 0
    %23 = vsyncpa [#allocation11], 0
    %s24 = scalar_lea.sflag [#allocation11], 1
    %25 = vsyncpa %s24, 0
    %26 = vsyncpa [#allocation6], 0
    %s27 = scalar_lea.sflag [#allocation6], 1
    %28 = vsyncpa %s27, 0
    loop: start=0, step=1, limit=6
    $region2: #{tpu_custom_call.1} parent=1 // loop_pre_header
      _
    $region3: #{tpu_custom_call.1} parent=1 // loop_header
      %s30 = sphi 0, %s34
      %p31 = scmp.ge.s32.totalorder %s30, 6
      %s37 = sphi 0, %s49
      %s38 = sphi 0, %s45
      %s39 = sphi 0, %s37
      %s40 = sphi 0, %s38
      %s41 = sphi 0, %s39
      %s42 = sphi 0, %s40
      %s52 = sphi 0, %s54
      %s55 = sphi 0, %s52
      %s56 = sphi 0, %s55
      %s72 = sphi 0, %s56
      %s78 = sphi 0, %s80
      %s81 = sphi 0, %s78
      %s82 = sphi 0, %s81
      %s98 = sphi 0, %s82
      %s104 = sphi 0, %s106
      %s107 = sphi 0, %s104
      %s108 = sphi 0, %s107
      %s124 = sphi 0, %s108
      %s130 = sphi 0, %s132
      %s133 = sphi 0, %s130
      %s134 = sphi 0, %s133
      %s150 = sphi 0, %s134
      %s156 = sphi 0, %s158
      %s159 = sphi 0, %s156
      %s160 = sphi 0, %s159
      %s176 = sphi 0, %s160
      %s182 = sphi 0, %s184
      %s185 = sphi 0, %s182
      %s186 = sphi 0, %s185
      %s202 = sphi 0, %s186
      %s208 = sphi 0, %s210
      %s211 = sphi 0, %s208
      %s212 = sphi 0, %s211
      %s228 = sphi 0, %s212
      %s234 = sphi 0, %s236
      %s237 = sphi 0, %s234
      %s238 = sphi 0, %s237
      %s254 = sphi 0, %s238
      %s260 = sphi 0, %s262
      %s263 = sphi 0, %s260
      %s264 = sphi 0, %s263
      %s280 = sphi 0, %s264
      %s286 = sphi 0, %s288
      %s289 = sphi 0, %s286
      %s290 = sphi 0, %s289
      %s306 = sphi 0, %s290
      %s312 = sphi 0, %s314
      %s315 = sphi 0, %s312
      %s316 = sphi 0, %s315
      %s332 = sphi 0, %s316
      %s336 = sphi 0, %s336
      %s338 = sphi 0, %s336
      %s339 = sphi 0, %s338
      %s353 = sphi 0, %s339
      %s359 = sphi 0, %s361
      %s362 = sphi 0, %s359
      %s363 = sphi 0, %s362
      %s379 = sphi 0, %s363
    $region4: #{tpu_custom_call.1} parent=1 // loop_header_branch
      %33 = sbr.rel (%p31) target = $region8
    $region5: #{tpu_custom_call.1} parent=1 // loop_body
      %s35 = ssub.s32 %s30, 1
      %s36 = ssub.s32 %s30, 2
      %s43 = sadd.s32 1, %s38
      %p44 = scmp.ge.s32.totalorder %s43, 2
      %s45 = scalar_select %p44, 0, %s43
      %s46 = sadd.s32 1, %s37
      %s47 = scalar_select %p44, %s46, %s37
      %p48 = scmp.ge.s32.totalorder %s47, 2
      %s49 = scalar_select %p48, 0, %s47
      %s50 = ssub.s32 %s37, %s49
      %p51 = scmp.eq.s32.totalorder %s50, 0
      %s53 = sadd.s32 %s52, 1
      %s54 = scalar_select %p51, %s52, %s53
      %p57 = pneg %p51
      %p58 = scmp.eq.s32.totalorder %s30, 3
      %p59 = por %p57, %p58
      %p60 = scmp.ne.s32.totalorder %s52, %s55
      %p61 = scmp.eq.s32.totalorder %s30, 0
      %p62 = por %p60, %p61
      %p63 = scmp.ne.s32.totalorder %s52, %s55
      %p64 = scmp.eq.s32.totalorder %s35, 3
      %p65 = por %p63, %p64
      %p66 = scmp.ne.s32.totalorder %s55, %s56
      %p67 = scmp.eq.s32.totalorder %s35, 0
      %p68 = por %p66, %p67
      %p69 = scmp.ne.s32.totalorder %s55, %s56
      %p70 = scmp.eq.s32.totalorder %s36, 3
      %p71 = por %p69, %p70
      %p73 = scmp.ne.s32.totalorder %s56, %s72
      %p74 = scmp.eq.s32.totalorder %s36, 0
      %p75 = por %p73, %p74
      %s76 = ssub.s32 %s37, %s49
      %p77 = scmp.eq.s32.totalorder %s76, 0
      %s79 = sadd.s32 %s78, 1
      %s80 = scalar_select %p77, %s78, %s79
      %p83 = pneg %p77
      %p84 = scmp.eq.s32.totalorder %s30, 3
      %p85 = por %p83, %p84
      %p86 = scmp.ne.s32.totalorder %s78, %s81
      %p87 = scmp.eq.s32.totalorder %s30, 0
      %p88 = por %p86, %p87
      %p89 = scmp.ne.s32.totalorder %s78, %s81
      %p90 = scmp.eq.s32.totalorder %s35, 3
      %p91 = por %p89, %p90
      %p92 = scmp.ne.s32.totalorder %s81, %s82
      %p93 = scmp.eq.s32.totalorder %s35, 0
      %p94 = por %p92, %p93
      %p95 = scmp.ne.s32.totalorder %s81, %s82
      %p96 = scmp.eq.s32.totalorder %s36, 3
      %p97 = por %p95, %p96
      %p99 = scmp.ne.s32.totalorder %s82, %s98
      %p100 = scmp.eq.s32.totalorder %s36, 0
      %p101 = por %p99, %p100
      %s102 = ssub.s32 %s38, %s45
      %p103 = scmp.eq.s32.totalorder %s102, 0
      %s105 = sadd.s32 %s104, 1
      %s106 = scalar_select %p103, %s104, %s105
      %p109 = pneg %p103
      %p110 = scmp.eq.s32.totalorder %s30, 3
      %p111 = por %p109, %p110
      %p112 = scmp.ne.s32.totalorder %s104, %s107
      %p113 = scmp.eq.s32.totalorder %s30, 0
      %p114 = por %p112, %p113
      %p115 = scmp.ne.s32.totalorder %s104, %s107
      %p116 = scmp.eq.s32.totalorder %s35, 3
      %p117 = por %p115, %p116
      %p118 = scmp.ne.s32.totalorder %s107, %s108
      %p119 = scmp.eq.s32.totalorder %s35, 0
      %p120 = por %p118, %p119
      %p121 = scmp.ne.s32.totalorder %s107, %s108
      %p122 = scmp.eq.s32.totalorder %s36, 3
      %p123 = por %p121, %p122
      %p125 = scmp.ne.s32.totalorder %s108, %s124
      %p126 = scmp.eq.s32.totalorder %s36, 0
      %p127 = por %p125, %p126
      %s128 = ssub.s32 %s38, %s45
      %p129 = scmp.eq.s32.totalorder %s128, 0
      %s131 = sadd.s32 %s130, 1
      %s132 = scalar_select %p129, %s130, %s131
      %p135 = pneg %p129
      %p136 = scmp.eq.s32.totalorder %s30, 3
      %p137 = por %p135, %p136
      %p138 = scmp.ne.s32.totalorder %s130, %s133
      %p139 = scmp.eq.s32.totalorder %s30, 0
      %p140 = por %p138, %p139
      %p141 = scmp.ne.s32.totalorder %s130, %s133
      %p142 = scmp.eq.s32.totalorder %s35, 3
      %p143 = por %p141, %p142
      %p144 = scmp.ne.s32.totalorder %s133, %s134
      %p145 = scmp.eq.s32.totalorder %s35, 0
      %p146 = por %p144, %p145
      %p147 = scmp.ne.s32.totalorder %s133, %s134
      %p148 = scmp.eq.s32.totalorder %s36, 3
      %p149 = por %p147, %p148
      %p151 = scmp.ne.s32.totalorder %s134, %s150
      %p152 = scmp.eq.s32.totalorder %s36, 0
      %p153 = por %p151, %p152
      %s154 = ssub.s32 %s38, %s45
      %p155 = scmp.eq.s32.totalorder %s154, 0
      %s157 = sadd.s32 %s156, 1
      %s158 = scalar_select %p155, %s156, %s157
      %p161 = pneg %p155
      %p162 = scmp.eq.s32.totalorder %s30, 3
      %p163 = por %p161, %p162
      %p164 = scmp.ne.s32.totalorder %s156, %s159
      %p165 = scmp.eq.s32.totalorder %s30, 0
      %p166 = por %p164, %p165
      %p167 = scmp.ne.s32.totalorder %s156, %s159
      %p168 = scmp.eq.s32.totalorder %s35, 3
      %p169 = por %p167, %p168
      %p170 = scmp.ne.s32.totalorder %s159, %s160
      %p171 = scmp.eq.s32.totalorder %s35, 0
      %p172 = por %p170, %p171
      %p173 = scmp.ne.s32.totalorder %s159, %s160
      %p174 = scmp.eq.s32.totalorder %s36, 3
      %p175 = por %p173, %p174
      %p177 = scmp.ne.s32.totalorder %s160, %s176
      %p178 = scmp.eq.s32.totalorder %s36, 0
      %p179 = por %p177, %p178
      %s180 = ssub.s32 %s38, %s45
      %p181 = scmp.eq.s32.totalorder %s180, 0
      %s183 = sadd.s32 %s182, 1
      %s184 = scalar_select %p181, %s182, %s183
      %p187 = pneg %p181
      %p188 = scmp.eq.s32.totalorder %s30, 3
      %p189 = por %p187, %p188
      %p190 = scmp.ne.s32.totalorder %s182, %s185
      %p191 = scmp.eq.s32.totalorder %s30, 0
      %p192 = por %p190, %p191
      %p193 = scmp.ne.s32.totalorder %s182, %s185
      %p194 = scmp.eq.s32.totalorder %s35, 3
      %p195 = por %p193, %p194
      %p196 = scmp.ne.s32.totalorder %s185, %s186
      %p197 = scmp.eq.s32.totalorder %s35, 0
      %p198 = por %p196, %p197
      %p199 = scmp.ne.s32.totalorder %s185, %s186
      %p200 = scmp.eq.s32.totalorder %s36, 3
      %p201 = por %p199, %p200
      %p203 = scmp.ne.s32.totalorder %s186, %s202
      %p204 = scmp.eq.s32.totalorder %s36, 0
      %p205 = por %p203, %p204
      %s206 = ssub.s32 %s38, %s45
      %p207 = scmp.eq.s32.totalorder %s206, 0
      %s209 = sadd.s32 %s208, 1
      %s210 = scalar_select %p207, %s208, %s209
      %p213 = pneg %p207
      %p214 = scmp.eq.s32.totalorder %s30, 3
      %p215 = por %p213, %p214
      %p216 = scmp.ne.s32.totalorder %s208, %s211
      %p217 = scmp.eq.s32.totalorder %s30, 0
      %p218 = por %p216, %p217
      %p219 = scmp.ne.s32.totalorder %s208, %s211
      %p220 = scmp.eq.s32.totalorder %s35, 3
      %p221 = por %p219, %p220
      %p222 = scmp.ne.s32.totalorder %s211, %s212
      %p223 = scmp.eq.s32.totalorder %s35, 0
      %p224 = por %p222, %p223
      %p225 = scmp.ne.s32.totalorder %s211, %s212
      %p226 = scmp.eq.s32.totalorder %s36, 3
      %p227 = por %p225, %p226
      %p229 = scmp.ne.s32.totalorder %s212, %s228
      %p230 = scmp.eq.s32.totalorder %s36, 0
      %p231 = por %p229, %p230
      %s232 = ssub.s32 %s38, %s45
      %p233 = scmp.eq.s32.totalorder %s232, 0
      %s235 = sadd.s32 %s234, 1
      %s236 = scalar_select %p233, %s234, %s235
      %p239 = pneg %p233
      %p240 = scmp.eq.s32.totalorder %s30, 3
      %p241 = por %p239, %p240
      %p242 = scmp.ne.s32.totalorder %s234, %s237
      %p243 = scmp.eq.s32.totalorder %s30, 0
      %p244 = por %p242, %p243
      %p245 = scmp.ne.s32.totalorder %s234, %s237
      %p246 = scmp.eq.s32.totalorder %s35, 3
      %p247 = por %p245, %p246
      %p248 = scmp.ne.s32.totalorder %s237, %s238
      %p249 = scmp.eq.s32.totalorder %s35, 0
      %p250 = por %p248, %p249
      %p251 = scmp.ne.s32.totalorder %s237, %s238
      %p252 = scmp.eq.s32.totalorder %s36, 3
      %p253 = por %p251, %p252
      %p255 = scmp.ne.s32.totalorder %s238, %s254
      %p256 = scmp.eq.s32.totalorder %s36, 0
      %p257 = por %p255, %p256
      %s258 = ssub.s32 %s38, %s45
      %p259 = scmp.eq.s32.totalorder %s258, 0
      %s261 = sadd.s32 %s260, 1
      %s262 = scalar_select %p259, %s260, %s261
      %p265 = pneg %p259
      %p266 = scmp.eq.s32.totalorder %s30, 3
      %p267 = por %p265, %p266
      %p268 = scmp.ne.s32.totalorder %s260, %s263
      %p269 = scmp.eq.s32.totalorder %s30, 0
      %p270 = por %p268, %p269
      %p271 = scmp.ne.s32.totalorder %s260, %s263
      %p272 = scmp.eq.s32.totalorder %s35, 3
      %p273 = por %p271, %p272
      %p274 = scmp.ne.s32.totalorder %s263, %s264
      %p275 = scmp.eq.s32.totalorder %s35, 0
      %p276 = por %p274, %p275
      %p277 = scmp.ne.s32.totalorder %s263, %s264
      %p278 = scmp.eq.s32.totalorder %s36, 3
      %p279 = por %p277, %p278
      %p281 = scmp.ne.s32.totalorder %s264, %s280
      %p282 = scmp.eq.s32.totalorder %s36, 0
      %p283 = por %p281, %p282
      %s284 = ssub.s32 %s38, %s45
      %p285 = scmp.eq.s32.totalorder %s284, 0
      %s287 = sadd.s32 %s286, 1
      %s288 = scalar_select %p285, %s286, %s287
      %p291 = pneg %p285
      %p292 = scmp.eq.s32.totalorder %s30, 3
      %p293 = por %p291, %p292
      %p294 = scmp.ne.s32.totalorder %s286, %s289
      %p295 = scmp.eq.s32.totalorder %s30, 0
      %p296 = por %p294, %p295
      %p297 = scmp.ne.s32.totalorder %s286, %s289
      %p298 = scmp.eq.s32.totalorder %s35, 3
      %p299 = por %p297, %p298
      %p300 = scmp.ne.s32.totalorder %s289, %s290
      %p301 = scmp.eq.s32.totalorder %s35, 0
      %p302 = por %p300, %p301
      %p303 = scmp.ne.s32.totalorder %s289, %s290
      %p304 = scmp.eq.s32.totalorder %s36, 3
      %p305 = por %p303, %p304
      %p307 = scmp.ne.s32.totalorder %s290, %s306
      %p308 = scmp.eq.s32.totalorder %s36, 0
      %p309 = por %p307, %p308
      %s310 = ssub.s32 %s38, %s45
      %p311 = scmp.eq.s32.totalorder %s310, 0
      %s313 = sadd.s32 %s312, 1
      %s314 = scalar_select %p311, %s312, %s313
      %p317 = pneg %p311
      %p318 = scmp.eq.s32.totalorder %s30, 3
      %p319 = por %p317, %p318
      %p320 = scmp.ne.s32.totalorder %s312, %s315
      %p321 = scmp.eq.s32.totalorder %s30, 0
      %p322 = por %p320, %p321
      %p323 = scmp.ne.s32.totalorder %s312, %s315
      %p324 = scmp.eq.s32.totalorder %s35, 3
      %p325 = por %p323, %p324
      %p326 = scmp.ne.s32.totalorder %s315, %s316
      %p327 = scmp.eq.s32.totalorder %s35, 0
      %p328 = por %p326, %p327
      %p329 = scmp.ne.s32.totalorder %s315, %s316
      %p330 = scmp.eq.s32.totalorder %s36, 3
      %p331 = por %p329, %p330
      %p333 = scmp.ne.s32.totalorder %s316, %s332
      %p334 = scmp.eq.s32.totalorder %s36, 0
      %p335 = por %p333, %p334
      %s337 = sadd.s32 %s336, 1
      %p340 = scmp.eq.s32.totalorder %s30, 3
      %p341 = scmp.ne.s32.totalorder %s336, %s338
      %p342 = scmp.eq.s32.totalorder %s30, 0
      %p343 = por %p341, %p342
      %p344 = scmp.ne.s32.totalorder %s336, %s338
      %p345 = scmp.eq.s32.totalorder %s35, 3
      %p346 = por %p344, %p345
      %p347 = scmp.ne.s32.totalorder %s338, %s339
      %p348 = scmp.eq.s32.totalorder %s35, 0
      %p349 = por %p347, %p348
      %p350 = scmp.ne.s32.totalorder %s338, %s339
      %p351 = scmp.eq.s32.totalorder %s36, 3
      %p352 = por %p350, %p351
      %p354 = scmp.ne.s32.totalorder %s339, %s353
      %p355 = scmp.eq.s32.totalorder %s36, 0
      %p356 = por %p354, %p355
      %s357 = ssub.s32 %s37, %s49
      %p358 = scmp.eq.s32.totalorder %s357, 0
      %s360 = sadd.s32 %s359, 1
      %s361 = scalar_select %p358, %s359, %s360
      %p364 = pneg %p358
      %p365 = scmp.eq.s32.totalorder %s30, 3
      %p366 = por %p364, %p365
      %p367 = scmp.ne.s32.totalorder %s359, %s362
      %p368 = scmp.eq.s32.totalorder %s30, 0
      %p369 = por %p367, %p368
      %p370 = scmp.ne.s32.totalorder %s359, %s362
      %p371 = scmp.eq.s32.totalorder %s35, 3
      %p372 = por %p370, %p371
      %p373 = scmp.ne.s32.totalorder %s362, %s363
      %p374 = scmp.eq.s32.totalorder %s35, 0
      %p375 = por %p373, %p374
      %p376 = scmp.ne.s32.totalorder %s362, %s363
      %p377 = scmp.eq.s32.totalorder %s36, 3
      %p378 = por %p376, %p377
      %p380 = scmp.ne.s32.totalorder %s363, %s379
      %p381 = scmp.eq.s32.totalorder %s36, 0
      %p382 = por %p380, %p381
      %p383 = scmp.le.s32.totalorder 1, %s30
      %p384 = scmp.lt.s32.totalorder %s30, 5
      %p385 = pnand %p383, %p384
      %p386 = pneg %p385
      // Predicated region
      $region9: #{tpu_custom_call.1} parent=5 // pred_check
        _
      $region10: #{tpu_custom_call.1} parent=5 // pred_check_branch
        %388 = sbr.rel (%p385) target = $region12
      $region11: #{tpu_custom_call.1} parent=5 // pred_region
        %s389 = ssub.s32 %s30, 1
        // Predicated region
        $region13: #{tpu_custom_call.1} parent=11 // pred_check
          %p390 = pneg %p349
        $region14: #{tpu_custom_call.1} parent=11 // pred_check_branch
          %392 = sbr.rel (%p390) target = $region16
        $region15: #{tpu_custom_call.1} parent=11 // pred_region
          _
        $region16: #{tpu_custom_call.1} parent=11 // pred_fallthru
          _
      $region12: #{tpu_custom_call.1} parent=5 // pred_fallthru
        _
      %p393 = scmp.lt.s32.totalorder %s30, 4
      // Predicated region
      $region17: #{tpu_custom_call.1} parent=5 // pred_check
        %p394 = pneg %p393
      $region18: #{tpu_custom_call.1} parent=5 // pred_check_branch
        %396 = sbr.rel (%p394) target = $region20
      $region19: #{tpu_custom_call.1} parent=5 // pred_region
        // Predicated region
        $region21: #{tpu_custom_call.1} parent=19 // pred_check
          %p397 = pneg %p62
        $region22: #{tpu_custom_call.1} parent=19 // pred_check_branch
          %399 = sbr.rel (%p397) target = $region24
        $region23: #{tpu_custom_call.1} parent=19 // pred_region
          %s400 = sand.u32 %s52, 1
          %s401 = scalar_lea.sflag [#allocation5], %s400
          %s402 = sand.u32 %s52, 1
          %s403 = scalar_lea.vmem [#allocation4], %s402
          %s405 = ssub.s32 16, 16
          %406 = vsyncadd %s401, %s405
          %s407 = smul.addr %s37, 16
          %s408 = scalar_lea.hbm %s0, %s407
          %s410 = sshll.u32 %s403, 4
          %s411 = int_to_ptr.vmem [resolvable:$true] %s410
          %413 = dma.hbm_to_vmem [thread:$0]  %s408, 16, %s411, %s401
        $region24: #{tpu_custom_call.1} parent=19 // pred_fallthru
          _
        // Predicated region
        $region25: #{tpu_custom_call.1} parent=19 // pred_check
          %p414 = pneg %p88
        $region26: #{tpu_custom_call.1} parent=19 // pred_check_branch
          %416 = sbr.rel (%p414) target = $region28
        $region27: #{tpu_custom_call.1} parent=19 // pred_region
          %s417 = sand.u32 %s30, 1
          %s418 = scalar_lea.sflag [#allocation8], %s417
          %s419 = sand.u32 %s78, 1
          %s420 = smul.addr %s419, 8
          %s421 = scalar_lea.vmem [#allocation7], %s420
          %s423 = ssub.s32 128, 128
          %424 = vsyncadd %s418, %s423
          %s425 = smul.addr %s37, 128
          %s426 = scalar_lea.hbm %s1, %s425
          %s428 = sshll.u32 %s421, 4
          %s429 = int_to_ptr.vmem [resolvable:$true] %s428
          %431 = dma.hbm_to_vmem [thread:$0]  %s426, 128, %s429, %s418
        $region28: #{tpu_custom_call.1} parent=19 // pred_fallthru
          _
        // Predicated region
        $region29: #{tpu_custom_call.1} parent=19 // pred_check
          %p432 = pneg %p114
        $region30: #{tpu_custom_call.1} parent=19 // pred_check_branch
          %434 = sbr.rel (%p432) target = $region32
        $region31: #{tpu_custom_call.1} parent=19 // pred_region
          %p435 = scmp.lt.s32.totalorder %s38, 1
          %s436 = scalar_select %p435, %s38, 1
          %s437 = smul.addr %s436, 4
          %s438 = smul.addr %s437, 4
          %s439 = scalar_lea.vmem %s2, %s438
        $region32: #{tpu_custom_call.1} parent=19 // pred_fallthru
          _
        // Predicated region
        $region33: #{tpu_custom_call.1} parent=19 // pred_check
          %p440 = pneg %p140
        $region34: #{tpu_custom_call.1} parent=19 // pred_check_branch
          %442 = sbr.rel (%p440) target = $region36
        $region35: #{tpu_custom_call.1} parent=19 // pred_region
          %s443 = sand.u32 %s30, 1
          %s444 = scalar_lea.sflag [#allocation8], %s443
          %s445 = sand.u32 %s130, 1
          %s446 = scalar_lea.vmem [#allocation9], %s445
          %s448 = ssub.s32 16, 16
          %449 = vsyncadd %s444, %s448
          %s450 = smul.addr %s38, 16
          %s451 = scalar_lea.hbm %s3, %s450
          %s453 = sshll.u32 %s446, 4
          %s454 = int_to_ptr.vmem [resolvable:$true] %s453
          %456 = dma.hbm_to_vmem [thread:$0]  %s451, 16, %s454, %s444
        $region36: #{tpu_custom_call.1} parent=19 // pred_fallthru
          _
        // Predicated region
        $region37: #{tpu_custom_call.1} parent=19 // pred_check
          %p457 = pneg %p166
        $region38: #{tpu_custom_call.1} parent=19 // pred_check_branch
          %459 = sbr.rel (%p457) target = $region40
        $region39: #{tpu_custom_call.1} parent=19 // pred_region
          %p460 = scmp.lt.s32.totalorder %s38, 1
          %s461 = scalar_select %p460, %s38, 1
          %s462 = smul.addr %s461, 4
          %s463 = smul.addr %s462, 4
          %s464 = scalar_lea.vmem %s4, %s463
        $region40: #{tpu_custom_call.1} parent=19 // pred_fallthru
          _
        // Predicated region
        $region41: #{tpu_custom_call.1} parent=19 // pred_check
          %p465 = pneg %p192
        $region42: #{tpu_custom_call.1} parent=19 // pred_check_branch
          %467 = sbr.rel (%p465) target = $region44
        $region43: #{tpu_custom_call.1} parent=19 // pred_region
          %s468 = sand.u32 %s182, 1
          %s469 = scalar_lea.sflag [#allocation11], %s468
          %s470 = sand.u32 %s182, 1
          %s471 = scalar_lea.vmem [#allocation10], %s470
          %s473 = ssub.s32 16, 16
          %474 = vsyncadd %s469, %s473
          %s475 = smul.addr %s38, 16
          %s476 = scalar_lea.hbm %s5, %s475
          %s478 = sshll.u32 %s471, 4
          %s479 = int_to_ptr.vmem [resolvable:$true] %s478
          %481 = dma.hbm_to_vmem [thread:$0]  %s476, 16, %s479, %s469
        $region44: #{tpu_custom_call.1} parent=19 // pred_fallthru
          _
        // Predicated region
        $region45: #{tpu_custom_call.1} parent=19 // pred_check
          %p482 = pneg %p218
        $region46: #{tpu_custom_call.1} parent=19 // pred_check_branch
          %484 = sbr.rel (%p482) target = $region48
        $region47: #{tpu_custom_call.1} parent=19 // pred_region
          %p485 = scmp.lt.s32.totalorder %s38, 1
          %s486 = scalar_select %p485, %s38, 1
          %s487 = smul.addr %s486, 4
          %s488 = smul.addr %s487, 4
          %s489 = scalar_lea.vmem %s6, %s488
        $region48: #{tpu_custom_call.1} parent=19 // pred_fallthru
          _
        // Predicated region
        $region49: #{tpu_custom_call.1} parent=19 // pred_check
          %p490 = pneg %p244
        $region50: #{tpu_custom_call.1} parent=19 // pred_check_branch
          %492 = sbr.rel (%p490) target = $region52
        $region51: #{tpu_custom_call.1} parent=19 // pred_region
          %p493 = scmp.lt.s32.totalorder %s38, 1
          %s494 = scalar_select %p493, %s38, 1
          %s495 = scalar_lea.vmem %s7, %s494
        $region52: #{tpu_custom_call.1} parent=19 // pred_fallthru
          _
        // Predicated region
        $region53: #{tpu_custom_call.1} parent=19 // pred_check
          %p496 = pneg %p270
        $region54: #{tpu_custom_call.1} parent=19 // pred_check_branch
          %498 = sbr.rel (%p496) target = $region56
        $region55: #{tpu_custom_call.1} parent=19 // pred_region
          %p499 = scmp.lt.s32.totalorder %s38, 1
          %s500 = scalar_select %p499, %s38, 1
          %s501 = smul.addr %s500, 8
          %s502 = smul.addr %s501, 4
          %s503 = scalar_lea.vmem %s8, %s502
        $region56: #{tpu_custom_call.1} parent=19 // pred_fallthru
          _
        // Predicated region
        $region57: #{tpu_custom_call.1} parent=19 // pred_check
          %p504 = pneg %p296
        $region58: #{tpu_custom_call.1} parent=19 // pred_check_branch
          %506 = sbr.rel (%p504) target = $region60
        $region59: #{tpu_custom_call.1} parent=19 // pred_region
          %p507 = scmp.lt.s32.totalorder %s38, 1
          %s508 = scalar_select %p507, %s38, 1
          %s509 = scalar_lea.vmem %s9, %s508
        $region60: #{tpu_custom_call.1} parent=19 // pred_fallthru
          _
        // Predicated region
        $region61: #{tpu_custom_call.1} parent=19 // pred_check
          %p510 = pneg %p322
        $region62: #{tpu_custom_call.1} parent=19 // pred_check_branch
          %512 = sbr.rel (%p510) target = $region64
        $region63: #{tpu_custom_call.1} parent=19 // pred_region
          %p513 = scmp.lt.s32.totalorder %s38, 1
          %s514 = scalar_select %p513, %s38, 1
          %s515 = smul.addr %s514, 4
          %s516 = scalar_lea.vmem %s10, %s515
        $region64: #{tpu_custom_call.1} parent=19 // pred_fallthru
          _
      $region20: #{tpu_custom_call.1} parent=5 // pred_fallthru
        _
      %p517 = scmp.le.s32.totalorder 1, %s30
      %p518 = scmp.lt.s32.totalorder %s30, 5
      %p519 = pnand %p517, %p518
      %p520 = pneg %p519
      // Predicated region
      $region65: #{tpu_custom_call.1} parent=5 // pred_check
        _
      $region66: #{tpu_custom_call.1} parent=5 // pred_check_branch
        %522 = sbr.rel (%p519) target = $region68
      $region67: #{tpu_custom_call.1} parent=5 // pred_region
        %s523 = ssub.s32 %s30, 1
        %s524 = sand.u32 %s55, 1
        %s525 = scalar_lea.sflag [#allocation5], %s524
        %s526 = sand.u32 %s55, 1
        %s527 = scalar_lea.vmem [#allocation4], %s526
        // Predicated region
        $region69: #{tpu_custom_call.1} parent=67 // pred_check
          %p528 = pneg %p68
        $region70: #{tpu_custom_call.1} parent=67 // pred_check_branch
          %530 = sbr.rel (%p528) target = $region72
        $region71: #{tpu_custom_call.1} parent=67 // pred_region
          %531 = dma.done %s525, 16
        $region72: #{tpu_custom_call.1} parent=67 // pred_fallthru
          _
        %s532 = sand.u32 %s35, 1
        %s533 = scalar_lea.sflag [#allocation8], %s532
        %s534 = sand.u32 %s81, 1
        %s535 = smul.addr %s534, 8
        %s536 = scalar_lea.vmem [#allocation7], %s535
        // Predicated region
        $region73: #{tpu_custom_call.1} parent=67 // pred_check
          %p537 = pneg %p94
        $region74: #{tpu_custom_call.1} parent=67 // pred_check_branch
          %539 = sbr.rel (%p537) target = $region76
        $region75: #{tpu_custom_call.1} parent=67 // pred_region
          %540 = dma.done %s533, 128
        $region76: #{tpu_custom_call.1} parent=67 // pred_fallthru
          _
        %s541 = sand.u32 %s35, 1
        %s542 = scalar_lea.sflag [#allocation8], %s541
        %s543 = sand.u32 %s133, 1
        %s544 = scalar_lea.vmem [#allocation9], %s543
        // Predicated region
        $region77: #{tpu_custom_call.1} parent=67 // pred_check
          %p545 = pneg %p146
        $region78: #{tpu_custom_call.1} parent=67 // pred_check_branch
          %547 = sbr.rel (%p545) target = $region80
        $region79: #{tpu_custom_call.1} parent=67 // pred_region
          %548 = dma.done %s542, 16
        $region80: #{tpu_custom_call.1} parent=67 // pred_fallthru
          _
        %s549 = sand.u32 %s185, 1
        %s550 = scalar_lea.sflag [#allocation11], %s549
        %s551 = sand.u32 %s185, 1
        %s552 = scalar_lea.vmem [#allocation10], %s551
        // Predicated region
        $region81: #{tpu_custom_call.1} parent=67 // pred_check
          %p553 = pneg %p198
        $region82: #{tpu_custom_call.1} parent=67 // pred_check_branch
          %555 = sbr.rel (%p553) target = $region84
        $region83: #{tpu_custom_call.1} parent=67 // pred_region
          %556 = dma.done %s550, 16
        $region84: #{tpu_custom_call.1} parent=67 // pred_fallthru
          _
        %s557 = sand.u32 %s55, 1
        %s558 = scalar_lea.sflag [#allocation5], %s557
        %s559 = sand.u32 %s55, 1
        %s560 = scalar_lea.vmem [#allocation4], %s559
        %p561 = pneg %p68
        %p562 = pneg %p65
        %s563 = sand.u32 %s35, 1
        %s564 = scalar_lea.sflag [#allocation8], %s563
        %s565 = sand.u32 %s81, 1
        %s566 = smul.addr %s565, 8
        %s567 = scalar_lea.vmem [#allocation7], %s566
        %p568 = pneg %p94
        %p569 = pneg %p91
        %p570 = scmp.lt.s32.totalorder %s40, 1
        %s571 = scalar_select %p570, %s40, 1
        %s572 = smul.addr %s571, 4
        %s573 = smul.addr %s572, 4
        %s574 = scalar_lea.vmem %s2, %s573
        %p575 = pneg %p120
        %p576 = pneg %p117
        %s577 = sand.u32 %s35, 1
        %s578 = scalar_lea.sflag [#allocation8], %s577
        %s579 = sand.u32 %s133, 1
        %s580 = scalar_lea.vmem [#allocation9], %s579
        %p581 = pneg %p146
        %p582 = pneg %p143
        %p583 = scmp.lt.s32.totalorder %s40, 1
        %s584 = scalar_select %p583, %s40, 1
        %s585 = smul.addr %s584, 4
        %s586 = smul.addr %s585, 4
        %s587 = scalar_lea.vmem %s4, %s586
        %p588 = pneg %p172
        %p589 = pneg %p169
        %s590 = sand.u32 %s185, 1
        %s591 = scalar_lea.sflag [#allocation11], %s590
        %s592 = sand.u32 %s185, 1
        %s593 = scalar_lea.vmem [#allocation10], %s592
        %p594 = pneg %p198
        %p595 = pneg %p195
        %p596 = scmp.lt.s32.totalorder %s40, 1
        %s597 = scalar_select %p596, %s40, 1
        %s598 = smul.addr %s597, 4
        %s599 = smul.addr %s598, 4
        %s600 = scalar_lea.vmem %s6, %s599
        %p601 = pneg %p224
        %p602 = pneg %p221
        %p603 = scmp.lt.s32.totalorder %s40, 1
        %s604 = scalar_select %p603, %s40, 1
        %s605 = scalar_lea.vmem %s7, %s604
        %p606 = pneg %p250
        %p607 = pneg %p247
        %p608 = scmp.lt.s32.totalorder %s40, 1
        %s609 = scalar_select %p608, %s40, 1
        %s610 = smul.addr %s609, 8
        %s611 = smul.addr %s610, 4
        %s612 = scalar_lea.vmem %s8, %s611
        %p613 = pneg %p276
        %p614 = pneg %p273
        %p615 = scmp.lt.s32.totalorder %s40, 1
        %s616 = scalar_select %p615, %s40, 1
        %s617 = scalar_lea.vmem %s9, %s616
        %p618 = pneg %p302
        %p619 = pneg %p299
        %p620 = scmp.lt.s32.totalorder %s40, 1
        %s621 = scalar_select %p620, %s40, 1
        %s622 = smul.addr %s621, 4
        %s623 = scalar_lea.vmem %s10, %s622
        %p624 = pneg %p328
        %p625 = pneg %p325
        %p626 = pneg %p349
        %p627 = pneg %p346
        %p628 = pneg %p375
        %p629 = pneg %p372
        %s630 = sand.u32 %s362, 1
        %s631 = scalar_lea.sflag [#allocation6], %s630
        %s632 = sand.u32 %s362, 1
        %s633 = smul.addr %s632, 8
        %s634 = scalar_lea.vmem [#allocation12], %s633
        %p635 = scmp.lt.s32.totalorder %s40, 1
        %s636 = scalar_select %p635, %s40, 1
        %s637 = smul.addr %s636, 4
        %s638 = smul.addr %s637, 4
        %s639 = scalar_lea.vmem %s2, %s638
        %p640 = scmp.lt.s32.totalorder %s40, 1
        %s641 = scalar_select %p640, %s40, 1
        %s642 = smul.addr %s641, 4
        %s643 = smul.addr %s642, 4
        %s644 = scalar_lea.vmem %s4, %s643
        %p645 = scmp.lt.s32.totalorder %s40, 1
        %s646 = scalar_select %p645, %s40, 1
        %s647 = smul.addr %s646, 4
        %s648 = smul.addr %s647, 4
        %s649 = scalar_lea.vmem %s6, %s648
        %p650 = scmp.lt.s32.totalorder %s40, 1
        %s651 = scalar_select %p650, %s40, 1
        %s652 = scalar_lea.vmem %s7, %s651
        %p653 = scmp.lt.s32.totalorder %s40, 1
        %s654 = scalar_select %p653, %s40, 1
        %s655 = smul.addr %s654, 8
        %s656 = smul.addr %s655, 4
        %s657 = scalar_lea.vmem %s8, %s656
        %p658 = scmp.lt.s32.totalorder %s40, 1
        %s659 = scalar_select %p658, %s40, 1
        %s660 = scalar_lea.vmem %s9, %s659
        %p661 = scmp.lt.s32.totalorder %s40, 1
        %s662 = scalar_select %p661, %s40, 1
        %s663 = smul.addr %s662, 4
        %s664 = scalar_lea.vmem %s10, %s663
        %p666 = scmp.eq.s32.totalorder %s40, 0
        // Predicated region
        $region85: #{tpu_custom_call.1} parent=67 // pred_check
          %p667 = pneg %p666
        $region86: #{tpu_custom_call.1} parent=67 // pred_check_branch
          %669 = sbr.rel (%p667) target = $region88
        $region87: #{tpu_custom_call.1} parent=67 // pred_region
          %v670 = vld [vmem:[%s536] sm:$0xff]
          %vm671 = vcmask 261120
          %672 = vst.msk [vmem:[#allocation2] sm:$0xff] %vm671, %v670
        $region88: #{tpu_custom_call.1} parent=67 // pred_fallthru
          _
        %v673 = vld [vmem:[#allocation2] sm:$0xff]
        %v674 = vld [vmem:[%s527] sm:$0x1]
        %vm675 = vcmp.eq.f32.partialorder %v674, 0.0
        %v676 = vsel %vm675, -1e+09, 0.0
        %v677 = vld [vmem:[%s639] sm:$0xf]
        %v678 = vld [vmem:[%s639 + $0x4] sm:$0xf]
        %v679 = vld [vmem:[%s639 + $0x8] sm:$0xf]
        %v680 = vld [vmem:[%s639 + $0xc] sm:$0xf]
        %v681 = vld [vmem:[%s544] sm:$0x1]
        %v682 = vld [vmem:[%s644] sm:$0xf]
        %v683 = vld [vmem:[%s644 + $0x4] sm:$0xf]
        %v684 = vld [vmem:[%s644 + $0x8] sm:$0xf]
        %v685 = vld [vmem:[%s644 + $0xc] sm:$0xf]
        %v686 = vld [vmem:[%s552] sm:$0x1]
        %v687 = vld [vmem:[%s649] sm:$0xf]
        %v688 = vld [vmem:[%s649 + $0x4] sm:$0xf]
        %v689 = vld [vmem:[%s649 + $0x8] sm:$0xf]
        %v690 = vld [vmem:[%s649 + $0xc] sm:$0xf]
        %v691 = vld [vmem:[%s652] sm:$0x1]
        %v692 = vld [vmem:[%s657] sm:$0xf]
        %v693 = vld [vmem:[%s657 + $0x4] sm:$0xf]
        %v694 = vld [vmem:[%s657 + $0x8] sm:$0xf]
        %v695 = vld [vmem:[%s657 + $0xc] sm:$0xf]
        %v696 = vld [vmem:[%s657 + $0x10] sm:$0xf]
        %v697 = vld [vmem:[%s657 + $0x14] sm:$0xf]
        %v698 = vld [vmem:[%s657 + $0x18] sm:$0xf]
        %v699 = vld [vmem:[%s657 + $0x1c] sm:$0xf]
        %v700 = vld [vmem:[%s660] sm:$0x1]
        %v701 = vld [vmem:[%s664] sm:$0xf]
        %vm702 = vcmask 261120
        %v703 = vsel %vm702, %v673, 0.0
        %704 = vadd.xlane.f32.xlu0 %v703
        %v705 = vpop.xlane.xlu0 %704
        %v706 = vrcp.pop 32.0
        %v707 = vmul.f32 %v705, %v706
        %v708 = vsub.f32 %v673, %v707
        %v709 = vmul.f32 %v708, %v708
        %v710 = vsel %vm702, %v709, 0.0
        %711 = vadd.xlane.f32.xlu0 %v710
        %v712 = vpop.xlane.xlu0 %711
        %v713 = vmul.f32 %v712, 0.032258064
        %v714 = vrsqrt.pop %v713
        %v715 = vmul.f32 %v713, %v714
        %vm716 = vcmp.eq.f32.partialorder %v713, inf
        %v717 = vsel %vm716, %v713, %v715
        %vm718 = vcmp.eq.f32.partialorder %v713, 0.0
        %v719 = vand.u32 %v713, 2147483648
        %v720 = vsel %vm718, %v719, %v717
        %v721 = vadd.f32 %v720, 1e-06
        %v722 = vrcp.pop %v721
        %v723 = vlaneseq
        %v724 = vshrl.u32 %v723, 7
        %v725 = vsub.s32 0, %v724
        %v726 = vrot.slane %v701, %v725
        %v727 = vmul.f32 %v726, %v708
        %v728 = vmul.f32 %v727, %v722
        %v729 = vlaneseq
        %v730 = vshrl.u32 %v729, 7
        %v731 = vsub.s32 1, %v730
        %v732 = vrot.slane %v701, %v731
        %v733 = vadd.f32 %v728, %v732
        %v734 = vpack.c.bf16 %v733, %v733
        %v736 = vlaneseq
        %v737 = vshrl.u32 %v736, 7
        %v738 = vsub.s32 0, %v737
        %v739 = vrot.slane %v681, %v738
        %v745 = vunpack.c.l.b16 %v677
        %v746 = vunpack.c.l.b16 %v678
        %v747 = vunpack.c.l.b16 %v679
        %v748 = vunpack.c.l.b16 %v680
        %v749 = vpack.c.b16 %v746, %v745
        %v750 = vpack.c.b16 %v748, %v747
        %v754 = vsel %vm702, %v734, 0
        %756 = vmatprep.subr.bf16.mxu0 0
        %757 = vmatpush1.bf16.msra.mxu0 0
        %758 = vmatprep.subr.bf16.mxu0 0
        %759 = vmatpush1.bf16.msra.mxu0 0
        %760 = vmatprep.subr.bf16.mxu0 0
        %761 = vmatpush1.bf16.msra.mxu0 0
        %762 = vmatprep.subr.bf16.mxu0 0
        %763 = vmatpush1.bf16.msra.mxu0 0
        %764 = vmatprep.subr.bf16.mxu0 0
        %765 = vmatpush1.bf16.msra.mxu0 0
        %766 = vmatprep.subr.bf16.mxu0 0
        %767 = vmatpush1.bf16.msra.mxu0 0
        %768 = vmatprep.subr.bf16.mxu0 0
        %769 = vmatpush1.bf16.msra.mxu0 %v750
        %770 = vmatprep.subr.bf16.mxu0 0
        %771 = vmatpush1.bf16.msra.mxu0 %v749
        %772 = vmatprep.subr.bf16.mxu0 0
        %773 = vmatpush2.bf16.msra.mxu0 0
        %774 = vmatprep.subr.bf16.mxu0 0
        %775 = vmatpush2.bf16.msra.mxu0 0
        %776 = vmatprep.subr.bf16.mxu0 0
        %777 = vmatpush2.bf16.msra.mxu0 0
        %778 = vmatprep.subr.bf16.mxu0 0
        %779 = vmatpush2.bf16.msra.mxu0 0
        %780 = vmatprep.subr.bf16.mxu0 0
        %781 = vmatpush2.bf16.msra.mxu0 0
        %782 = vmatprep.subr.bf16.mxu0 0
        %783 = vmatpush2.bf16.msra.mxu0 0
        %784 = vmatprep.subr.bf16.mxu0 0
        %785 = vmatpush2.bf16.msra.mxu0 0
        %786 = vmatprep.subr.bf16.mxu0 0
        %787 = vmatpush2.bf16.msra.mxu0 0
        %788 = vmatprep.mubr.bf16.mxu0 0
        %789 = vmatmul.mubr.bf16.gmra.mxu0 %v754
        %v790 = vpop.f32.mrf.mxu0
        %v791 = vadd.f32 %v739, %v790
        %v792 = vpop.f32.mrf.mxu0
        %v793 = vpop.f32.mrf.mxu0
        %v794 = vpop.f32.mrf.mxu0
        %795 = vdwg.mxu0
        %v796 = vpack.c.bf16 %v791, %v791
        %798 = vrot.lane.b32.xlu0 %v796, 96
        %v799 = vpop.permute.xlu0 %798
        %vm800 = vcmask 64512
        %v802 = vsel %vm800, %v796, 0
        %v805 = vsel %vm800, %v799, 0
        %807 = vmatprep.subr.bf16.mxu0 0
        %808 = vmatpush1.bf16.xpose.msra.mxu0 0
        %809 = vmatprep.subr.bf16.mxu0 0
        %810 = vmatpush1.bf16.xpose.msra.mxu0 0
        %811 = vmatprep.subr.bf16.mxu0 0
        %812 = vmatpush1.bf16.xpose.msra.mxu0 0
        %813 = vmatprep.subr.bf16.mxu0 0
        %814 = vmatpush1.bf16.xpose.msra.mxu0 0
        %815 = vmatprep.subr.bf16.mxu0 0
        %816 = vmatpush1.bf16.xpose.msra.mxu0 0
        %817 = vmatprep.subr.bf16.mxu0 0
        %818 = vmatpush1.bf16.xpose.msra.mxu0 0
        %819 = vmatprep.subr.bf16.mxu0 0
        %820 = vmatpush1.bf16.xpose.msra.mxu0 0
        %821 = vmatprep.subr.bf16.mxu0 0
        %822 = vmatpush1.bf16.xpose.msra.mxu0 %v805
        %823 = vmatprep.subr.bf16.mxu0 0
        %824 = vmatpush2.bf16.xpose.msra.mxu0 0
        %825 = vmatprep.subr.bf16.mxu0 0
        %826 = vmatpush2.bf16.xpose.msra.mxu0 0
        %827 = vmatprep.subr.bf16.mxu0 0
        %828 = vmatpush2.bf16.xpose.msra.mxu0 0
        %829 = vmatprep.subr.bf16.mxu0 0
        %830 = vmatpush2.bf16.xpose.msra.mxu0 0
        %831 = vmatprep.subr.bf16.mxu0 0
        %832 = vmatpush2.bf16.xpose.msra.mxu0 0
        %833 = vmatprep.subr.bf16.mxu0 0
        %834 = vmatpush2.bf16.xpose.msra.mxu0 0
        %835 = vmatprep.subr.bf16.mxu0 0
        %836 = vmatpush2.bf16.xpose.msra.mxu0 0
        %837 = vmatprep.subr.bf16.mxu0 0
        %838 = vmatpush2.bf16.xpose.msra.mxu0 0
        %839 = vmatprep.mubr.bf16.mxu0 0
        %840 = vmatmul.mubr.bf16.gmra.mxu0 %v802
        %v841 = vpop.f32.mrf.mxu0
        %v842 = vadd.f32 0.0, %v841
        %v843 = vpop.f32.mrf.mxu0
        %v844 = vpop.f32.mrf.mxu0
        %v845 = vpop.f32.mrf.mxu0
        %846 = vdwg.mxu0
        %v847 = vmul.f32 %v842, 0.35355338
        %v849 = vlaneseq
        %v850 = vshrl.u32 %v849, 7
        %v851 = vsub.s32 0, %v850
        %v852 = vrot.slane %v676, %v851
        %v854 = vadd.f32 %v847, %v852
        %v855 = vsel %vm800, %v854, -inf
        %856 = vmax.xlane.f32.xlu0 %v855
        %v857 = vpop.xlane.xlu0 %856
        %v858 = vsub.f32 %v854, %v857
        %v859 = vmul.f32 %v858, 1.442695
        %v860 = vpow.pop %v859
        %v861 = vsel %vm800, %v860, 0.0
        %862 = vadd.xlane.f32.xlu0 %v861
        %v863 = vpop.xlane.xlu0 %862
        %v864 = vrcp.pop %v863
        %v865 = vmul.f32 %v860, %v864
        %v866 = vpack.c.bf16 %v865, %v865
        %867 = vrot.lane.b32.xlu0 %v796, 64
        %v868 = vpop.permute.xlu0 %867
        %v870 = vsel %vm800, %v866, 0
        %vm872 = vcmask 1043456
        %v874 = vsel %vm872, %v868, 0
        %876 = vmatprep.subr.bf16.mxu0 0
        %877 = vmatpush1.bf16.msra.mxu0 0
        %878 = vmatprep.subr.bf16.mxu0 0
        %879 = vmatpush1.bf16.msra.mxu0 0
        %880 = vmatprep.subr.bf16.mxu0 0
        %881 = vmatpush1.bf16.msra.mxu0 0
        %882 = vmatprep.subr.bf16.mxu0 0
        %883 = vmatpush1.bf16.msra.mxu0 0
        %884 = vmatprep.subr.bf16.mxu0 0
        %885 = vmatpush1.bf16.msra.mxu0 0
        %886 = vmatprep.subr.bf16.mxu0 0
        %887 = vmatpush1.bf16.msra.mxu0 0
        %888 = vmatprep.subr.bf16.mxu0 0
        %889 = vmatpush1.bf16.msra.mxu0 0
        %890 = vmatprep.subr.bf16.mxu0 0
        %891 = vmatpush1.bf16.msra.mxu0 %v874
        %892 = vmatprep.subr.bf16.mxu0 0
        %893 = vmatpush2.bf16.msra.mxu0 0
        %894 = vmatprep.subr.bf16.mxu0 0
        %895 = vmatpush2.bf16.msra.mxu0 0
        %896 = vmatprep.subr.bf16.mxu0 0
        %897 = vmatpush2.bf16.msra.mxu0 0
        %898 = vmatprep.subr.bf16.mxu0 0
        %899 = vmatpush2.bf16.msra.mxu0 0
        %900 = vmatprep.subr.bf16.mxu0 0
        %901 = vmatpush2.bf16.msra.mxu0 0
        %902 = vmatprep.subr.bf16.mxu0 0
        %903 = vmatpush2.bf16.msra.mxu0 0
        %904 = vmatprep.subr.bf16.mxu0 0
        %905 = vmatpush2.bf16.msra.mxu0 0
        %906 = vmatprep.subr.bf16.mxu0 0
        %907 = vmatpush2.bf16.msra.mxu0 0
        %908 = vmatprep.mubr.bf16.mxu0 0
        %909 = vmatmul.mubr.bf16.gmra.mxu0 %v870
        %v910 = vpop.f32.mrf.mxu0
        %v911 = vadd.f32 0.0, %v910
        %v912 = vpop.f32.mrf.mxu0
        %v913 = vpop.f32.mrf.mxu0
        %v914 = vpop.f32.mrf.mxu0
        %915 = vdwg.mxu0
        %v916 = vpack.c.bf16 %v911, %v911
        %vm917 = vcmask 60416
        %918 = vst.msk [vmem:[#allocation3] sm:$0xf] %vm917, %v916
        %919 = vrot.lane.b32.xlu0 %v796, 120
        %v920 = vpop.permute.xlu0 %919
        %921 = vrot.lane.b32.xlu0 %v796, 88
        %v922 = vpop.permute.xlu0 %921
        %v924 = vsel %vm800, %v920, 0
        %v927 = vsel %vm800, %v922, 0
        %929 = vmatprep.subr.bf16.mxu0 0
        %930 = vmatpush1.bf16.xpose.msra.mxu0 0
        %931 = vmatprep.subr.bf16.mxu0 0
        %932 = vmatpush1.bf16.xpose.msra.mxu0 0
        %933 = vmatprep.subr.bf16.mxu0 0
        %934 = vmatpush1.bf16.xpose.msra.mxu0 0
        %935 = vmatprep.subr.bf16.mxu0 0
        %936 = vmatpush1.bf16.xpose.msra.mxu0 0
        %937 = vmatprep.subr.bf16.mxu0 0
        %938 = vmatpush1.bf16.xpose.msra.mxu0 0
        %939 = vmatprep.subr.bf16.mxu0 0
        %940 = vmatpush1.bf16.xpose.msra.mxu0 0
        %941 = vmatprep.subr.bf16.mxu0 0
        %942 = vmatpush1.bf16.xpose.msra.mxu0 0
        %943 = vmatprep.subr.bf16.mxu0 0
        %944 = vmatpush1.bf16.xpose.msra.mxu0 %v927
        %945 = vmatprep.subr.bf16.mxu0 0
        %946 = vmatpush2.bf16.xpose.msra.mxu0 0
        %947 = vmatprep.subr.bf16.mxu0 0
        %948 = vmatpush2.bf16.xpose.msra.mxu0 0
        %949 = vmatprep.subr.bf16.mxu0 0
        %950 = vmatpush2.bf16.xpose.msra.mxu0 0
        %951 = vmatprep.subr.bf16.mxu0 0
        %952 = vmatpush2.bf16.xpose.msra.mxu0 0
        %953 = vmatprep.subr.bf16.mxu0 0
        %954 = vmatpush2.bf16.xpose.msra.mxu0 0
        %955 = vmatprep.subr.bf16.mxu0 0
        %956 = vmatpush2.bf16.xpose.msra.mxu0 0
        %957 = vmatprep.subr.bf16.mxu0 0
        %958 = vmatpush2.bf16.xpose.msra.mxu0 0
        %959 = vmatprep.subr.bf16.mxu0 0
        %960 = vmatpush2.bf16.xpose.msra.mxu0 0
        %961 = vmatprep.mubr.bf16.mxu0 0
        %962 = vmatmul.mubr.bf16.gmra.mxu0 %v924
        %v963 = vpop.f32.mrf.mxu0
        %v964 = vadd.f32 0.0, %v963
        %v965 = vpop.f32.mrf.mxu0
        %v966 = vpop.f32.mrf.mxu0
        %v967 = vpop.f32.mrf.mxu0
        %968 = vdwg.mxu0
        %v969 = vmul.f32 %v964, 0.35355338
        %v970 = vadd.f32 %v969, %v852
        %v971 = vsel %vm800, %v970, -inf
        %972 = vmax.xlane.f32.xlu0 %v971
        %v973 = vpop.xlane.xlu0 %972
        %v974 = vsub.f32 %v970, %v973
        %v975 = vmul.f32 %v974, 1.442695
        %v976 = vpow.pop %v975
        %v977 = vsel %vm800, %v976, 0.0
        %978 = vadd.xlane.f32.xlu0 %v977
        %v979 = vpop.xlane.xlu0 %978
        %v980 = vrcp.pop %v979
        %v981 = vmul.f32 %v976, %v980
        %v982 = vpack.c.bf16 %v981, %v981
        %983 = vrot.lane.b32.xlu0 %v796, 56
        %v984 = vpop.permute.xlu0 %983
        %v986 = vsel %vm800, %v982, 0
        %v989 = vsel %vm872, %v984, 0
        %991 = vmatprep.subr.bf16.mxu0 0
        %992 = vmatpush1.bf16.msra.mxu0 0
        %993 = vmatprep.subr.bf16.mxu0 0
        %994 = vmatpush1.bf16.msra.mxu0 0
        %995 = vmatprep.subr.bf16.mxu0 0
        %996 = vmatpush1.bf16.msra.mxu0 0
        %997 = vmatprep.subr.bf16.mxu0 0
        %998 = vmatpush1.bf16.msra.mxu0 0
        %999 = vmatprep.subr.bf16.mxu0 0
        %1000 = vmatpush1.bf16.msra.mxu0 0
        %1001 = vmatprep.subr.bf16.mxu0 0
        %1002 = vmatpush1.bf16.msra.mxu0 0
        %1003 = vmatprep.subr.bf16.mxu0 0
        %1004 = vmatpush1.bf16.msra.mxu0 0
        %1005 = vmatprep.subr.bf16.mxu0 0
        %1006 = vmatpush1.bf16.msra.mxu0 %v989
        %1007 = vmatprep.subr.bf16.mxu0 0
        %1008 = vmatpush2.bf16.msra.mxu0 0
        %1009 = vmatprep.subr.bf16.mxu0 0
        %1010 = vmatpush2.bf16.msra.mxu0 0
        %1011 = vmatprep.subr.bf16.mxu0 0
        %1012 = vmatpush2.bf16.msra.mxu0 0
        %1013 = vmatprep.subr.bf16.mxu0 0
        %1014 = vmatpush2.bf16.msra.mxu0 0
        %1015 = vmatprep.subr.bf16.mxu0 0
        %1016 = vmatpush2.bf16.msra.mxu0 0
        %1017 = vmatprep.subr.bf16.mxu0 0
        %1018 = vmatpush2.bf16.msra.mxu0 0
        %1019 = vmatprep.subr.bf16.mxu0 0
        %1020 = vmatpush2.bf16.msra.mxu0 0
        %1021 = vmatprep.subr.bf16.mxu0 0
        %1022 = vmatpush2.bf16.msra.mxu0 0
        %1023 = vmatprep.mubr.bf16.mxu0 0
        %1024 = vmatmul.mubr.bf16.gmra.mxu0 %v986
        %v1025 = vpop.f32.mrf.mxu0
        %v1026 = vadd.f32 0.0, %v1025
        %v1027 = vpop.f32.mrf.mxu0
        %v1028 = vpop.f32.mrf.mxu0
        %v1029 = vpop.f32.mrf.mxu0
        %1030 = vdwg.mxu0
        %v1031 = vpack.c.bf16 %v1026, %v1026
        %v1033 = vunpack.c.l.b16 %v1031
        %v1034 = vpack.c.b16 %v1033, %v1033
        %1035 = vrot.lane.b32.xlu0 %v1034, 8
        %v1036 = vpop.permute.xlu0 %1035
        %vm1038 = vcmask 126016
        %1039 = vst.msk [vmem:[#allocation3] sm:$0xf] %vm1038, %v1036
        %1040 = vrot.lane.b32.xlu0 %v796, 112
        %v1041 = vpop.permute.xlu0 %1040
        %1042 = vrot.lane.b32.xlu0 %v796, 80
        %v1043 = vpop.permute.xlu0 %1042
        %v1045 = vsel %vm800, %v1041, 0
        %v1048 = vsel %vm800, %v1043, 0
        %1050 = vmatprep.subr.bf16.mxu0 0
        %1051 = vmatpush1.bf16.xpose.msra.mxu0 0
        %1052 = vmatprep.subr.bf16.mxu0 0
        %1053 = vmatpush1.bf16.xpose.msra.mxu0 0
        %1054 = vmatprep.subr.bf16.mxu0 0
        %1055 = vmatpush1.bf16.xpose.msra.mxu0 0
        %1056 = vmatprep.subr.bf16.mxu0 0
        %1057 = vmatpush1.bf16.xpose.msra.mxu0 0
        %1058 = vmatprep.subr.bf16.mxu0 0
        %1059 = vmatpush1.bf16.xpose.msra.mxu0 0
        %1060 = vmatprep.subr.bf16.mxu0 0
        %1061 = vmatpush1.bf16.xpose.msra.mxu0 0
        %1062 = vmatprep.subr.bf16.mxu0 0
        %1063 = vmatpush1.bf16.xpose.msra.mxu0 0
        %1064 = vmatprep.subr.bf16.mxu0 0
        %1065 = vmatpush1.bf16.xpose.msra.mxu0 %v1048
        %1066 = vmatprep.subr.bf16.mxu0 0
        %1067 = vmatpush2.bf16.xpose.msra.mxu0 0
        %1068 = vmatprep.subr.bf16.mxu0 0
        %1069 = vmatpush2.bf16.xpose.msra.mxu0 0
        %1070 = vmatprep.subr.bf16.mxu0 0
        %1071 = vmatpush2.bf16.xpose.msra.mxu0 0
        %1072 = vmatprep.subr.bf16.mxu0 0
        %1073 = vmatpush2.bf16.xpose.msra.mxu0 0
        %1074 = vmatprep.subr.bf16.mxu0 0
        %1075 = vmatpush2.bf16.xpose.msra.mxu0 0
        %1076 = vmatprep.subr.bf16.mxu0 0
        %1077 = vmatpush2.bf16.xpose.msra.mxu0 0
        %1078 = vmatprep.subr.bf16.mxu0 0
        %1079 = vmatpush2.bf16.xpose.msra.mxu0 0
        %1080 = vmatprep.subr.bf16.mxu0 0
        %1081 = vmatpush2.bf16.xpose.msra.mxu0 0
        %1082 = vmatprep.mubr.bf16.mxu0 0
        %1083 = vmatmul.mubr.bf16.gmra.mxu0 %v1045
        %v1084 = vpop.f32.mrf.mxu0
        %v1085 = vadd.f32 0.0, %v1084
        %v1086 = vpop.f32.mrf.mxu0
        %v1087 = vpop.f32.mrf.mxu0
        %v1088 = vpop.f32.mrf.mxu0
        %1089 = vdwg.mxu0
        %v1090 = vmul.f32 %v1085, 0.35355338
        %v1091 = vadd.f32 %v1090, %v852
        %v1092 = vsel %vm800, %v1091, -inf
        %1093 = vmax.xlane.f32.xlu0 %v1092
        %v1094 = vpop.xlane.xlu0 %1093
        %v1095 = vsub.f32 %v1091, %v1094
        %v1096 = vmul.f32 %v1095, 1.442695
        %v1097 = vpow.pop %v1096
        %v1098 = vsel %vm800, %v1097, 0.0
        %1099 = vadd.xlane.f32.xlu0 %v1098
        %v1100 = vpop.xlane.xlu0 %1099
        %v1101 = vrcp.pop %v1100
        %v1102 = vmul.f32 %v1097, %v1101
        %v1103 = vpack.c.bf16 %v1102, %v1102
        %1104 = vrot.lane.b32.xlu0 %v796, 48
        %v1105 = vpop.permute.xlu0 %1104
        %v1107 = vsel %vm800, %v1103, 0
        %v1110 = vsel %vm872, %v1105, 0
        %1112 = vmatprep.subr.bf16.mxu0 0
        %1113 = vmatpush1.bf16.msra.mxu0 0
        %1114 = vmatprep.subr.bf16.mxu0 0
        %1115 = vmatpush1.bf16.msra.mxu0 0
        %1116 = vmatprep.subr.bf16.mxu0 0
        %1117 = vmatpush1.bf16.msra.mxu0 0
        %1118 = vmatprep.subr.bf16.mxu0 0
        %1119 = vmatpush1.bf16.msra.mxu0 0
        %1120 = vmatprep.subr.bf16.mxu0 0
        %1121 = vmatpush1.bf16.msra.mxu0 0
        %1122 = vmatprep.subr.bf16.mxu0 0
        %1123 = vmatpush1.bf16.msra.mxu0 0
        %1124 = vmatprep.subr.bf16.mxu0 0
        %1125 = vmatpush1.bf16.msra.mxu0 0
        %1126 = vmatprep.subr.bf16.mxu0 0
        %1127 = vmatpush1.bf16.msra.mxu0 %v1110
        %1128 = vmatprep.subr.bf16.mxu0 0
        %1129 = vmatpush2.bf16.msra.mxu0 0
        %1130 = vmatprep.subr.bf16.mxu0 0
        %1131 = vmatpush2.bf16.msra.mxu0 0
        %1132 = vmatprep.subr.bf16.mxu0 0
        %1133 = vmatpush2.bf16.msra.mxu0 0
        %1134 = vmatprep.subr.bf16.mxu0 0
        %1135 = vmatpush2.bf16.msra.mxu0 0
        %1136 = vmatprep.subr.bf16.mxu0 0
        %1137 = vmatpush2.bf16.msra.mxu0 0
        %1138 = vmatprep.subr.bf16.mxu0 0
        %1139 = vmatpush2.bf16.msra.mxu0 0
        %1140 = vmatprep.subr.bf16.mxu0 0
        %1141 = vmatpush2.bf16.msra.mxu0 0
        %1142 = vmatprep.subr.bf16.mxu0 0
        %1143 = vmatpush2.bf16.msra.mxu0 0
        %1144 = vmatprep.mubr.bf16.mxu0 0
        %1145 = vmatmul.mubr.bf16.gmra.mxu0 %v1107
        %v1146 = vpop.f32.mrf.mxu0
        %v1147 = vadd.f32 0.0, %v1146
        %v1148 = vpop.f32.mrf.mxu0
        %v1149 = vpop.f32.mrf.mxu0
        %v1150 = vpop.f32.mrf.mxu0
        %1151 = vdwg.mxu0
        %v1152 = vpack.c.bf16 %v1147, %v1147
        %v1154 = vunpack.c.l.b16 %v1152
        %v1155 = vpack.c.b16 %v1154, %v1154
        %1156 = vrot.lane.b32.xlu0 %v1155, 16
        %v1157 = vpop.permute.xlu0 %1156
        %vm1159 = vcmask 191616
        %1160 = vst.msk [vmem:[#allocation3] sm:$0xf] %vm1159, %v1157
        %1161 = vrot.lane.b32.xlu0 %v796, 104
        %v1162 = vpop.permute.xlu0 %1161
        %1163 = vrot.lane.b32.xlu0 %v796, 72
        %v1164 = vpop.permute.xlu0 %1163
        %v1166 = vsel %vm800, %v1162, 0
        %v1169 = vsel %vm800, %v1164, 0
        %1171 = vmatprep.subr.bf16.mxu0 0
        %1172 = vmatpush1.bf16.xpose.msra.mxu0 0
        %1173 = vmatprep.subr.bf16.mxu0 0
        %1174 = vmatpush1.bf16.xpose.msra.mxu0 0
        %1175 = vmatprep.subr.bf16.mxu0 0
        %1176 = vmatpush1.bf16.xpose.msra.mxu0 0
        %1177 = vmatprep.subr.bf16.mxu0 0
        %1178 = vmatpush1.bf16.xpose.msra.mxu0 0
        %1179 = vmatprep.subr.bf16.mxu0 0
        %1180 = vmatpush1.bf16.xpose.msra.mxu0 0
        %1181 = vmatprep.subr.bf16.mxu0 0
        %1182 = vmatpush1.bf16.xpose.msra.mxu0 0
        %1183 = vmatprep.subr.bf16.mxu0 0
        %1184 = vmatpush1.bf16.xpose.msra.mxu0 0
        %1185 = vmatprep.subr.bf16.mxu0 0
        %1186 = vmatpush1.bf16.xpose.msra.mxu0 %v1169
        %1187 = vmatprep.subr.bf16.mxu0 0
        %1188 = vmatpush2.bf16.xpose.msra.mxu0 0
        %1189 = vmatprep.subr.bf16.mxu0 0
        %1190 = vmatpush2.bf16.xpose.msra.mxu0 0
        %1191 = vmatprep.subr.bf16.mxu0 0
        %1192 = vmatpush2.bf16.xpose.msra.mxu0 0
        %1193 = vmatprep.subr.bf16.mxu0 0
        %1194 = vmatpush2.bf16.xpose.msra.mxu0 0
        %1195 = vmatprep.subr.bf16.mxu0 0
        %1196 = vmatpush2.bf16.xpose.msra.mxu0 0
        %1197 = vmatprep.subr.bf16.mxu0 0
        %1198 = vmatpush2.bf16.xpose.msra.mxu0 0
        %1199 = vmatprep.subr.bf16.mxu0 0
        %1200 = vmatpush2.bf16.xpose.msra.mxu0 0
        %1201 = vmatprep.subr.bf16.mxu0 0
        %1202 = vmatpush2.bf16.xpose.msra.mxu0 0
        %1203 = vmatprep.mubr.bf16.mxu0 0
        %1204 = vmatmul.mubr.bf16.gmra.mxu0 %v1166
        %v1205 = vpop.f32.mrf.mxu0
        %v1206 = vadd.f32 0.0, %v1205
        %v1207 = vpop.f32.mrf.mxu0
        %v1208 = vpop.f32.mrf.mxu0
        %v1209 = vpop.f32.mrf.mxu0
        %1210 = vdwg.mxu0
        %v1211 = vmul.f32 %v1206, 0.35355338
        %v1212 = vadd.f32 %v1211, %v852
        %v1213 = vsel %vm800, %v1212, -inf
        %1214 = vmax.xlane.f32.xlu0 %v1213
        %v1215 = vpop.xlane.xlu0 %1214
        %v1216 = vsub.f32 %v1212, %v1215
        %v1217 = vmul.f32 %v1216, 1.442695
        %v1218 = vpow.pop %v1217
        %v1219 = vsel %vm800, %v1218, 0.0
        %1220 = vadd.xlane.f32.xlu0 %v1219
        %v1221 = vpop.xlane.xlu0 %1220
        %v1222 = vrcp.pop %v1221
        %v1223 = vmul.f32 %v1218, %v1222
        %v1224 = vpack.c.bf16 %v1223, %v1223
        %1225 = vrot.lane.b32.xlu0 %v796, 40
        %v1226 = vpop.permute.xlu0 %1225
        %v1228 = vsel %vm800, %v1224, 0
        %v1231 = vsel %vm872, %v1226, 0
        %1233 = vmatprep.subr.bf16.mxu0 0
        %1234 = vmatpush1.bf16.msra.mxu0 0
        %1235 = vmatprep.subr.bf16.mxu0 0
        %1236 = vmatpush1.bf16.msra.mxu0 0
        %1237 = vmatprep.subr.bf16.mxu0 0
        %1238 = vmatpush1.bf16.msra.mxu0 0
        %1239 = vmatprep.subr.bf16.mxu0 0
        %1240 = vmatpush1.bf16.msra.mxu0 0
        %1241 = vmatprep.subr.bf16.mxu0 0
        %1242 = vmatpush1.bf16.msra.mxu0 0
        %1243 = vmatprep.subr.bf16.mxu0 0
        %1244 = vmatpush1.bf16.msra.mxu0 0
        %1245 = vmatprep.subr.bf16.mxu0 0
        %1246 = vmatpush1.bf16.msra.mxu0 0
        %1247 = vmatprep.subr.bf16.mxu0 0
        %1248 = vmatpush1.bf16.msra.mxu0 %v1231
        %1249 = vmatprep.subr.bf16.mxu0 0
        %1250 = vmatpush2.bf16.msra.mxu0 0
        %1251 = vmatprep.subr.bf16.mxu0 0
        %1252 = vmatpush2.bf16.msra.mxu0 0
        %1253 = vmatprep.subr.bf16.mxu0 0
        %1254 = vmatpush2.bf16.msra.mxu0 0
        %1255 = vmatprep.subr.bf16.mxu0 0
        %1256 = vmatpush2.bf16.msra.mxu0 0
        %1257 = vmatprep.subr.bf16.mxu0 0
        %1258 = vmatpush2.bf16.msra.mxu0 0
        %1259 = vmatprep.subr.bf16.mxu0 0
        %1260 = vmatpush2.bf16.msra.mxu0 0
        %1261 = vmatprep.subr.bf16.mxu0 0
        %1262 = vmatpush2.bf16.msra.mxu0 0
        %1263 = vmatprep.subr.bf16.mxu0 0
        %1264 = vmatpush2.bf16.msra.mxu0 0
        %1265 = vmatprep.mubr.bf16.mxu0 0
        %1266 = vmatmul.mubr.bf16.gmra.mxu0 %v1228
        %v1267 = vpop.f32.mrf.mxu0
        %v1268 = vadd.f32 0.0, %v1267
        %v1269 = vpop.f32.mrf.mxu0
        %v1270 = vpop.f32.mrf.mxu0
        %v1271 = vpop.f32.mrf.mxu0
        %1272 = vdwg.mxu0
        %v1273 = vpack.c.bf16 %v1268, %v1268
        %v1275 = vunpack.c.l.b16 %v1273
        %v1276 = vpack.c.b16 %v1275, %v1275
        %1277 = vrot.lane.b32.xlu0 %v1276, 24
        %v1278 = vpop.permute.xlu0 %1277
        %vm1280 = vcmask 257216
        %1281 = vst.msk [vmem:[#allocation3] sm:$0xf] %vm1280, %v1278
        %v1282 = vld [vmem:[#allocation3] sm:$0xf]
        %v1284 = vlaneseq
        %v1285 = vshrl.u32 %v1284, 7
        %v1286 = vsub.s32 0, %v1285
        %v1287 = vrot.slane %v686, %v1286
        %v1293 = vunpack.c.l.b16 %v682
        %v1294 = vunpack.c.l.b16 %v683
        %v1295 = vunpack.c.l.b16 %v684
        %v1296 = vunpack.c.l.b16 %v685
        %v1297 = vpack.c.b16 %v1294, %v1293
        %v1298 = vpack.c.b16 %v1296, %v1295
        %v1302 = vsel %vm702, %v1282, 0
        %1304 = vmatprep.subr.bf16.mxu0 0
        %1305 = vmatpush1.bf16.msra.mxu0 0
        %1306 = vmatprep.subr.bf16.mxu0 0
        %1307 = vmatpush1.bf16.msra.mxu0 0
        %1308 = vmatprep.subr.bf16.mxu0 0
        %1309 = vmatpush1.bf16.msra.mxu0 0
        %1310 = vmatprep.subr.bf16.mxu0 0
        %1311 = vmatpush1.bf16.msra.mxu0 0
        %1312 = vmatprep.subr.bf16.mxu0 0
        %1313 = vmatpush1.bf16.msra.mxu0 0
        %1314 = vmatprep.subr.bf16.mxu0 0
        %1315 = vmatpush1.bf16.msra.mxu0 0
        %1316 = vmatprep.subr.bf16.mxu0 0
        %1317 = vmatpush1.bf16.msra.mxu0 %v1298
        %1318 = vmatprep.subr.bf16.mxu0 0
        %1319 = vmatpush1.bf16.msra.mxu0 %v1297
        %1320 = vmatprep.subr.bf16.mxu0 0
        %1321 = vmatpush2.bf16.msra.mxu0 0
        %1322 = vmatprep.subr.bf16.mxu0 0
        %1323 = vmatpush2.bf16.msra.mxu0 0
        %1324 = vmatprep.subr.bf16.mxu0 0
        %1325 = vmatpush2.bf16.msra.mxu0 0
        %1326 = vmatprep.subr.bf16.mxu0 0
        %1327 = vmatpush2.bf16.msra.mxu0 0
        %1328 = vmatprep.subr.bf16.mxu0 0
        %1329 = vmatpush2.bf16.msra.mxu0 0
        %1330 = vmatprep.subr.bf16.mxu0 0
        %1331 = vmatpush2.bf16.msra.mxu0 0
        %1332 = vmatprep.subr.bf16.mxu0 0
        %1333 = vmatpush2.bf16.msra.mxu0 0
        %1334 = vmatprep.subr.bf16.mxu0 0
        %1335 = vmatpush2.bf16.msra.mxu0 0
        %1336 = vmatprep.mubr.bf16.mxu0 0
        %1337 = vmatmul.mubr.bf16.gmra.mxu0 %v1302
        %v1338 = vpop.f32.mrf.mxu0
        %v1339 = vadd.f32 %v1287, %v1338
        %v1340 = vpop.f32.mrf.mxu0
        %v1341 = vpop.f32.mrf.mxu0
        %v1342 = vpop.f32.mrf.mxu0
        %1343 = vdwg.mxu0
        %v1344 = vadd.f32 %v673, %v1339
        %v1345 = vsel %vm702, %v1344, 0.0
        %1346 = vadd.xlane.f32.xlu0 %v1345
        %v1347 = vpop.xlane.xlu0 %1346
        %v1348 = vmul.f32 %v1347, %v706
        %v1349 = vsub.f32 %v1344, %v1348
        %v1350 = vmul.f32 %v1349, %v1349
        %v1351 = vsel %vm702, %v1350, 0.0
        %1352 = vadd.xlane.f32.xlu0 %v1351
        %v1353 = vpop.xlane.xlu0 %1352
        %v1354 = vmul.f32 %v1353, 0.032258064
        %v1355 = vrsqrt.pop %v1354
        %v1356 = vmul.f32 %v1354, %v1355
        %vm1357 = vcmp.eq.f32.partialorder %v1354, inf
        %v1358 = vsel %vm1357, %v1354, %v1356
        %vm1359 = vcmp.eq.f32.partialorder %v1354, 0.0
        %v1360 = vand.u32 %v1354, 2147483648
        %v1361 = vsel %vm1359, %v1360, %v1358
        %v1362 = vadd.f32 %v1361, 1e-06
        %v1363 = vrcp.pop %v1362
        %v1364 = vlaneseq
        %v1365 = vshrl.u32 %v1364, 7
        %v1366 = vsub.s32 2, %v1365
        %v1367 = vrot.slane %v701, %v1366
        %v1368 = vmul.f32 %v1367, %v1349
        %v1369 = vmul.f32 %v1368, %v1363
        %v1370 = vlaneseq
        %v1371 = vshrl.u32 %v1370, 7
        %v1372 = vsub.s32 3, %v1371
        %v1373 = vrot.slane %v701, %v1372
        %v1374 = vadd.f32 %v1369, %v1373
        %v1375 = vpack.c.bf16 %v1374, %v1374
        %v1377 = vlaneseq
        %v1378 = vshrl.u32 %v1377, 7
        %v1379 = vsub.s32 0, %v1378
        %v1380 = vrot.slane %v691, %v1379
        %v1386 = vunpack.c.l.b16 %v687
        %v1387 = vunpack.c.l.b16 %v688
        %v1388 = vunpack.c.l.b16 %v689
        %v1389 = vunpack.c.l.b16 %v690
        %v1390 = vpack.c.b16 %v1387, %v1386
        %v1391 = vpack.c.b16 %v1389, %v1388
        %v1395 = vsel %vm702, %v1375, 0
        %1397 = vmatprep.subr.bf16.mxu0 0
        %1398 = vmatpush1.bf16.msra.mxu0 0
        %1399 = vmatprep.subr.bf16.mxu0 0
        %1400 = vmatpush1.bf16.msra.mxu0 0
        %1401 = vmatprep.subr.bf16.mxu0 0
        %1402 = vmatpush1.bf16.msra.mxu0 0
        %1403 = vmatprep.subr.bf16.mxu0 0
        %1404 = vmatpush1.bf16.msra.mxu0 0
        %1405 = vmatprep.subr.bf16.mxu0 0
        %1406 = vmatpush1.bf16.msra.mxu0 0
        %1407 = vmatprep.subr.bf16.mxu0 0
        %1408 = vmatpush1.bf16.msra.mxu0 0
        %1409 = vmatprep.subr.bf16.mxu0 0
        %1410 = vmatpush1.bf16.msra.mxu0 %v1391
        %1411 = vmatprep.subr.bf16.mxu0 0
        %1412 = vmatpush1.bf16.msra.mxu0 %v1390
        %1413 = vmatprep.subr.bf16.mxu0 0
        %1414 = vmatpush2.bf16.msra.mxu0 0
        %1415 = vmatprep.subr.bf16.mxu0 0
        %1416 = vmatpush2.bf16.msra.mxu0 0
        %1417 = vmatprep.subr.bf16.mxu0 0
        %1418 = vmatpush2.bf16.msra.mxu0 0
        %1419 = vmatprep.subr.bf16.mxu0 0
        %1420 = vmatpush2.bf16.msra.mxu0 0
        %1421 = vmatprep.subr.bf16.mxu0 0
        %1422 = vmatpush2.bf16.msra.mxu0 0
        %1423 = vmatprep.subr.bf16.mxu0 0
        %1424 = vmatpush2.bf16.msra.mxu0 0
        %1425 = vmatprep.subr.bf16.mxu0 0
        %1426 = vmatpush2.bf16.msra.mxu0 0
        %1427 = vmatprep.subr.bf16.mxu0 0
        %1428 = vmatpush2.bf16.msra.mxu0 0
        %1429 = vmatprep.mubr.bf16.mxu0 0
        %1430 = vmatmul.mubr.bf16.gmra.mxu0 %v1395
        %v1431 = vpop.f32.mrf.mxu0
        %v1432 = vadd.f32 %v1380, %v1431
        %v1433 = vpop.f32.mrf.mxu0
        %v1434 = vpop.f32.mrf.mxu0
        %v1435 = vpop.f32.mrf.mxu0
        %1436 = vdwg.mxu0
        %v1437 = vmax.f32 %v1432, 0.0
        %v1438 = vpack.c.bf16 %v1437, %v1437
        %v1440 = vlaneseq
        %v1441 = vshrl.u32 %v1440, 7
        %v1442 = vsub.s32 0, %v1441
        %v1443 = vrot.slane %v700, %v1442
        %v1453 = vunpack.c.l.b16 %v692
        %v1454 = vunpack.c.l.b16 %v693
        %v1455 = vunpack.c.l.b16 %v694
        %v1456 = vunpack.c.l.b16 %v695
        %v1457 = vunpack.c.l.b16 %v696
        %v1458 = vunpack.c.l.b16 %v697
        %v1459 = vunpack.c.l.b16 %v698
        %v1460 = vunpack.c.l.b16 %v699
        %v1461 = vpack.c.b16 %v1454, %v1453
        %v1462 = vpack.c.b16 %v1456, %v1455
        %v1463 = vpack.c.b16 %v1458, %v1457
        %v1464 = vpack.c.b16 %v1460, %v1459
        %vm1469 = vcmask 523264
        %v1471 = vsel %vm1469, %v1438, 0
        %1473 = vmatprep.subr.bf16.mxu0 0
        %1474 = vmatpush1.bf16.msra.mxu0 0
        %1475 = vmatprep.subr.bf16.mxu0 0
        %1476 = vmatpush1.bf16.msra.mxu0 0
        %1477 = vmatprep.subr.bf16.mxu0 0
        %1478 = vmatpush1.bf16.msra.mxu0 0
        %1479 = vmatprep.subr.bf16.mxu0 0
        %1480 = vmatpush1.bf16.msra.mxu0 0
        %1481 = vmatprep.subr.bf16.mxu0 0
        %1482 = vmatpush1.bf16.msra.mxu0 %v1464
        %1483 = vmatprep.subr.bf16.mxu0 0
        %1484 = vmatpush1.bf16.msra.mxu0 %v1463
        %1485 = vmatprep.subr.bf16.mxu0 0
        %1486 = vmatpush1.bf16.msra.mxu0 %v1462
        %1487 = vmatprep.subr.bf16.mxu0 0
        %1488 = vmatpush1.bf16.msra.mxu0 %v1461
        %1489 = vmatprep.subr.bf16.mxu0 0
        %1490 = vmatpush2.bf16.msra.mxu0 0
        %1491 = vmatprep.subr.bf16.mxu0 0
        %1492 = vmatpush2.bf16.msra.mxu0 0
        %1493 = vmatprep.subr.bf16.mxu0 0
        %1494 = vmatpush2.bf16.msra.mxu0 0
        %1495 = vmatprep.subr.bf16.mxu0 0
        %1496 = vmatpush2.bf16.msra.mxu0 0
        %1497 = vmatprep.subr.bf16.mxu0 0
        %1498 = vmatpush2.bf16.msra.mxu0 0
        %1499 = vmatprep.subr.bf16.mxu0 0
        %1500 = vmatpush2.bf16.msra.mxu0 0
        %1501 = vmatprep.subr.bf16.mxu0 0
        %1502 = vmatpush2.bf16.msra.mxu0 0
        %1503 = vmatprep.subr.bf16.mxu0 0
        %1504 = vmatpush2.bf16.msra.mxu0 0
        %1505 = vmatprep.mubr.bf16.mxu0 0
        %1506 = vmatmul.mubr.bf16.gmra.mxu0 %v1471
        %v1507 = vpop.f32.mrf.mxu0
        %v1508 = vadd.f32 %v1443, %v1507
        %v1509 = vpop.f32.mrf.mxu0
        %v1510 = vpop.f32.mrf.mxu0
        %v1511 = vpop.f32.mrf.mxu0
        %1512 = vdwg.mxu0
        %v1513 = vadd.f32 %v1344, %v1508
        %1514 = vst.msk [vmem:[#allocation2] sm:$0xff] %vm702, %v1513
        %p1515 = scmp.eq.s32.totalorder %s40, 1
        // Predicated region
        $region89: #{tpu_custom_call.1} parent=67 // pred_check
          %p1516 = pneg %p1515
        $region90: #{tpu_custom_call.1} parent=67 // pred_check_branch
          %1518 = sbr.rel (%p1516) target = $region92
        $region91: #{tpu_custom_call.1} parent=67 // pred_region
          %v1519 = vld [vmem:[%s11] sm:$0x1]
          %v1520 = vld [vmem:[%s11 + $0x1] sm:$0x1]
          %v1521 = vsel %vm702, %v1513, 0.0
          %1522 = vadd.xlane.f32.xlu0 %v1521
          %v1523 = vpop.xlane.xlu0 %1522
          %v1524 = vmul.f32 %v1523, %v706
          %v1525 = vsub.f32 %v1513, %v1524
          %v1526 = vmul.f32 %v1525, %v1525
          %v1527 = vsel %vm702, %v1526, 0.0
          %1528 = vadd.xlane.f32.xlu0 %v1527
          %v1529 = vpop.xlane.xlu0 %1528
          %v1530 = vmul.f32 %v1529, 0.032258064
          %v1531 = vrsqrt.pop %v1530
          %v1532 = vmul.f32 %v1530, %v1531
          %vm1533 = vcmp.eq.f32.partialorder %v1530, inf
          %v1534 = vsel %vm1533, %v1530, %v1532
          %vm1535 = vcmp.eq.f32.partialorder %v1530, 0.0
          %v1536 = vand.u32 %v1530, 2147483648
          %v1537 = vsel %vm1535, %v1536, %v1534
          %v1538 = vadd.f32 %v1537, 1e-06
          %v1539 = vrcp.pop %v1538
          %v1540 = vmul.f32 1.0, %v1539
          %v1541 = vlaneseq
          %v1542 = vshrl.u32 %v1541, 7
          %v1543 = vsub.s32 0, %v1542
          %v1544 = vrot.slane %v1519, %v1543
          %v1545 = vmul.f32 %v1544, %v1525
          %v1546 = vmul.f32 %v1545, %v1540
          %v1547 = vlaneseq
          %v1548 = vshrl.u32 %v1547, 7
          %v1549 = vsub.s32 0, %v1548
          %v1550 = vrot.slane %v1520, %v1549
          %v1551 = vadd.f32 %v1546, %v1550
          %1552 = vst.msk [vmem:[%s634] sm:$0xff] %vm702, %v1551
        $region92: #{tpu_custom_call.1} parent=67 // pred_fallthru
          _
        %s1553 = sand.u32 %s362, 1
        %s1554 = scalar_lea.sflag [#allocation6], %s1553
        %s1555 = sand.u32 %s362, 1
        %s1556 = smul.addr %s1555, 8
        %s1557 = scalar_lea.vmem [#allocation12], %s1556
        // Predicated region
        $region93: #{tpu_custom_call.1} parent=67 // pred_check
          %p1558 = pneg %p372
        $region94: #{tpu_custom_call.1} parent=67 // pred_check_branch
          %1560 = sbr.rel (%p1558) target = $region96
        $region95: #{tpu_custom_call.1} parent=67 // pred_region
          %s1562 = ssub.s32 128, 128
          %1563 = vsyncadd %s1554, %s1562
          %s1564 = smul.addr %s39, 128
          %s1565 = scalar_lea.hbm %s12, %s1564
          %s1567 = sshll.u32 %s1557, 4
          %s1568 = int_to_ptr.vmem [resolvable:$true] %s1567
          %1570 = dma.vmem_to_hbm [thread:$0]  %s1568, 128, %s1565, %s1554
        $region96: #{tpu_custom_call.1} parent=67 // pred_fallthru
          _
      $region68: #{tpu_custom_call.1} parent=5 // pred_fallthru
        _
      %p1571 = scmp.le.s32.totalorder 2, %s30
      // Predicated region
      $region97: #{tpu_custom_call.1} parent=5 // pred_check
        %p1572 = pneg %p1571
      $region98: #{tpu_custom_call.1} parent=5 // pred_check_branch
        %1574 = sbr.rel (%p1572) target = $region100
      $region99: #{tpu_custom_call.1} parent=5 // pred_region
        %s1575 = ssub.s32 %s30, 2
        // Predicated region
        $region101: #{tpu_custom_call.1} parent=99 // pred_check
          %p1576 = pneg %p378
        $region102: #{tpu_custom_call.1} parent=99 // pred_check_branch
          %1578 = sbr.rel (%p1576) target = $region104
        $region103: #{tpu_custom_call.1} parent=99 // pred_region
          %s1579 = sand.u32 %s363, 1
          %s1580 = scalar_lea.sflag [#allocation6], %s1579
          %s1581 = sand.u32 %s363, 1
          %s1582 = smul.addr %s1581, 8
          %s1583 = scalar_lea.vmem [#allocation12], %s1582
          %1584 = dma.done %s1580, 128
        $region104: #{tpu_custom_call.1} parent=99 // pred_fallthru
          _
      $region100: #{tpu_custom_call.1} parent=5 // pred_fallthru
        _
    $region6: #{tpu_custom_call.1} parent=1 // loop_footer
      %s34 = sadd.s32 1, %s30
    $region7: #{tpu_custom_call.1} parent=1 // loop_footer_branch
      %29 = sbr.rel target = $region3
    $region8: #{tpu_custom_call.1} parent=1 // loop_exit
      _
    %1585 = vsyncpa [#allocation5], 1
    %s1586 = scalar_lea.sflag [#allocation5], 1
    %1587 = vsyncpa %s1586, 1
    %1588 = vsyncpa [#allocation8], 1
    %s1589 = scalar_lea.sflag [#allocation8], 1
    %1590 = vsyncpa %s1589, 1
    %1591 = vsyncpa [#allocation11], 1
    %s1592 = scalar_lea.sflag [#allocation11], 1
    %1593 = vsyncpa %s1592, 1
    %1594 = vsyncpa [#allocation6], 1
    %s1595 = scalar_lea.sflag [#allocation6], 1
    %1596 = vsyncpa %s1595, 1

</llo_original>
